<compile_context>
chip_gen: v6e
topology: v6e:2x2x1
jax: 0.10.0
libtpu: 0.0.40
codegen_flags: <defaults>
</compile_context>

<pallas_src>
import functools
import math

import jax
import jax.numpy as jnp
from jax import lax
from jax.experimental import pallas as pl
from jax.experimental.pallas import tpu as pltpu


def _round_up(x, m):
    return ((x + m - 1) // m) * m


def _vmem_capacity_bytes():
    try:
        return int(pltpu.get_tpu_info().vmem_capacity_bytes)
    except Exception:
        return 64 * 1024 * 1024  # conservative fallback (v7x per-core VMEM)


def _sliced_scratch_dtype(head_dim, compute_dtype):
    # Per-head Q/K/V/Wm tiles are dynamic *sublane* slices.  For packed dtypes
    # keep the slice offsets aligned to the (8 * packing)-row native tile;
    # otherwise fall back to f32 storage (correct everywhere, just more VMEM).
    packing = 4 // jnp.dtype(compute_dtype).itemsize
    return compute_dtype if head_dim % (8 * packing) == 0 else jnp.float32


def _mha_kernel(xq_ref, xk_ref, xv_ref,
                wq_ref, bq_ref, wk_ref, bk_ref, wv_ref, bv_ref,
                wmt_ref, bm_ref,
                o_ref,
                qc_ref, kc_ref, vc_ref, acc_ref,
                *, num_heads, head_dim, nk, nk_pad, compute_dtype):
    cdt = compute_dtype
    low_precision = jnp.dtype(cdt) != jnp.dtype(jnp.float32)
    qt = pl.program_id(1)

    # K / V projections: single full-width GEMMs, computed once per batch
    # element (independent of the query tile) and kept resident in VMEM
    # scratch (compute_dtype storage) across the query-tile axis.
    @pl.when(qt == 0)
    def _project_kv():
        kc_ref[...] = (jnp.dot(wk_ref[...], xk_ref[0],
                               preferred_element_type=jnp.float32)
                       + bk_ref[...]).astype(kc_ref.dtype)
        vc_ref[...] = (jnp.dot(wv_ref[...], xv_ref[0],
                               preferred_element_type=jnp.float32)
                       + bv_ref[...]).astype(vc_ref.dtype)

    # Q projection for this query tile (1/sqrt(head_dim) folded into Wq/bq).
    qc_ref[...] = (jnp.dot(wq_ref[...], xq_ref[0],
                           preferred_element_type=jnp.float32)
                   + bq_ref[...]).astype(qc_ref.dtype)

    acc_ref[...] = jnp.zeros_like(acc_ref)

    # Additive key-padding bias (one vadd per score element instead of a
    # compare+select every head); built once per grid step, hoisted out of
    # the head loop.
    if nk_pad > nk:
        col = lax.broadcasted_iota(jnp.int32, (1, nk_pad), 1)
        mask_bias = jnp.where(col < nk, 0.0, -1e30).astype(jnp.float32)
    else:
        mask_bias = None

    @pl.loop(0, num_heads)  # loop boundary bounds per-head live ranges
    def _head(h):
        off = pl.multiple_of(h * head_dim, head_dim)
        q_h = qc_ref[pl.ds(off, head_dim), :].astype(cdt)   # (hd, tq)
        k_h = kc_ref[pl.ds(off, head_dim), :].astype(cdt)   # (hd, nk_pad)
        v_h = vc_ref[pl.ds(off, head_dim), :].astype(cdt)   # (hd, nk_pad)

        # scores[n, m] = sum_d q_h[d, n] * k_h[d, m]   (scale pre-folded)
        s = lax.dot_general(q_h, k_h, (((0,), (0,)), ((), ())),
                            preferred_element_type=jnp.float32)  # (tq, nk_pad)
        if mask_bias is not None:
            s = s + mask_bias

        e = s - jnp.max(s, axis=-1, keepdims=True)
        # bf16 exp goes to the EUP on v6e/v7x; f32 path keeps full precision.
        # TODO(synk): on v5e (no bf16 EUP) prefer compute_dtype=float32 softmax.
        p = jnp.exp(e.astype(cdt)) if low_precision else jnp.exp(e)
        l = jnp.sum(p.astype(jnp.float32), axis=-1, keepdims=True)  # (tq, 1)

        # Unnormalized PV matmul, then deferred (exact) normalization applied
        # to the small (tq, head_dim) tile instead of the (tq, nk_pad) one.
        o_h = lax.dot_general(p, v_h, (((1,), (1,)), ((), ())),
                              preferred_element_type=jnp.float32)   # (tq, hd)
        o_h = o_h * pl.reciprocal(l, approx=False)

        # Per-head slice of the merge conv; accumulate channel-major so the
        # kernel emits (d_model, tq) directly (no wrapper transpose).
        wm_h = wmt_ref[pl.ds(off, head_dim), :].astype(cdt)         # (hd, d_model)
        acc_ref[...] += lax.dot_general(wm_h, o_h.astype(cdt),
                                        (((0,), (1,)), ((), ())),
                                        preferred_element_type=jnp.float32)

    o_ref[0] = (acc_ref[...] + bm_ref[...]).astype(o_ref.dtype)


def prepare_params(params, num_heads, *, compute_dtype=jnp.bfloat16):
    """One-time parameter prep (hoist out of the per-call path):
    head-major row permutation, 1/sqrt(head_dim) fold into Wq/bq, Wm transpose,
    and casts to compute_dtype (biases stay f32)."""
    Wq, bq, Wk, bk, Wv, bv, Wm, bm = params
    d_model = Wq.shape[0]
    assert d_model % num_heads == 0
    head_dim = d_model // num_heads
    scr_dt = _sliced_scratch_dtype(head_dim, compute_dtype)

    # Head-major permutation of projection output channels: permuted row
    # r = h*head_dim + d corresponds to original conv channel c = d*H + h,
    # reproducing PyTorch's .view(B, dim, H, N) channel ordering.
    d_idx = jnp.arange(head_dim)
    h_idx = jnp.arange(num_heads)
    row_perm = (d_idx[None, :] * num_heads + h_idx[:, None]).reshape(-1)

    inv_sqrt = 1.0 / math.sqrt(head_dim)
    f32 = jnp.float32
    wq_s = (Wq[row_perm, :].astype(f32) * inv_sqrt).astype(compute_dtype)
    bq_s = (bq[row_perm].astype(f32) * inv_sqrt)[:, None]          # (d_model, 1) f32
    wk_s = Wk[row_perm, :].astype(compute_dtype)
    bk_s = bk[row_perm][:, None].astype(f32)
    wv_s = Wv[row_perm, :].astype(compute_dtype)
    bv_s = bv[row_perm][:, None].astype(f32)
    wmt = Wm.T[row_perm, :].astype(scr_dt)   # (d_in head-major, d_out)
    bm_col = bm[:, None].astype(f32)         # (d_model, 1)
    return (wq_s, bq_s, wk_s, bk_s, wv_s, bv_s, wmt, bm_col)


def multi_headed_attention(q, k, v, params, num_heads, *,
                           compute_dtype=jnp.bfloat16, prepared=None):
    """q: (B, d_model, Nq); k, v: (B, d_model, Nk). Returns (B, d_model, Nq)."""
    B, d_model, nq = q.shape
    _, _, nk = k.shape
    assert k.shape == v.shape and k.shape[:2] == (B, d_model)
    assert d_model % num_heads == 0
    head_dim = d_model // num_heads

    if prepared is None:
        prepared = prepare_params(params, num_heads, compute_dtype=compute_dtype)
    wq_s, bq_s, wk_s, bk_s, wv_s, bv_s, wmt, bm_col = prepared

    scr_dt = _sliced_scratch_dtype(head_dim, compute_dtype)
    act_isz = jnp.dtype(compute_dtype).itemsize
    scr_isz = jnp.dtype(scr_dt).itemsize
    out_isz = jnp.dtype(q.dtype).itemsize

    nq_pad = _round_up(nq, 128)
    nk_pad = _round_up(nk, 128)

    # VMEM budget / query-tile size: raise the limit on 128-MiB parts
    # (v5e/v6e), keep headroom on v7x (64 MiB); pick the largest tq that
    # divides nq_pad and whose estimated footprint fits.
    vmem_cap = _vmem_capacity_bytes()
    vmem_limit = max(32 << 20, min(vmem_cap * 3 // 4, 104 << 20))

    def _est_vmem(tq_):
        scratch = ((d_model * tq_ + 2 * d_model * nk_pad) * scr_isz
                   + d_model * tq_ * 4)                         # qc/kc/vc + f32 acc
        blocks = (2 * d_model * tq_ * act_isz                   # xq (double-buffered)
                  + 4 * d_model * nk_pad * act_isz              # xk + xv (double-buffered)
                  + 2 * d_model * tq_ * out_isz)                # out (double-buffered)
        weights = 2 * (4 * d_model * d_model + 4 * d_model) * 4
        temps = tq_ * nk_pad * (8 + act_isz)                    # s/e (f32) + p per head
        return scratch + blocks + weights + temps

    tq = 128
    for cand in (512, 256):
        if nq_pad % cand == 0 and _est_vmem(cand) <= int(0.85 * vmem_limit):
            tq = cand
            break
    n_qt = nq_pad // tq

    # Activations are DMA'd in compute_dtype (halves HBM traffic + VMEM blocks).
    # TODO(synk): jnp.pad materializes HBM copies of q/k/v; if padding is the
    # common case, mask the ragged tail in-kernel instead.
    qp = q.astype(compute_dtype)
    kp = k.astype(compute_dtype)
    vp = v.astype(compute_dtype)
    if nq_pad > nq:
        qp = jnp.pad(qp, ((0, 0), (0, 0), (0, nq_pad - nq)))
    if nk_pad > nk:
        kp = jnp.pad(kp, ((0, 0), (0, 0), (0, nk_pad - nk)))
        vp = jnp.pad(vp, ((0, 0), (0, 0), (0, nk_pad - nk)))

    kernel = functools.partial(
        _mha_kernel, num_heads=num_heads, head_dim=head_dim,
        nk=nk, nk_pad=nk_pad, compute_dtype=compute_dtype)

    def _full(shape):
        nd = len(shape)
        return pl.BlockSpec(shape, lambda b, t, _nd=nd: (0,) * _nd)

    flops = int(B * (2 * d_model * d_model * (nq_pad + 2 * nk_pad)   # Q/K/V proj
                     + 4 * d_model * nq_pad * nk_pad                 # QK^T + PV
                     + 2 * d_model * d_model * nq_pad))              # merge
    transcendentals = int(B * num_heads * nq_pad * nk_pad)
    bytes_accessed = int(act_isz * B * d_model * (nq_pad + 2 * nk_pad)
                         + out_isz * B * d_model * nq_pad
                         + 4 * 4 * d_model * d_model)

    out_pad = pl.pallas_call(
        kernel,
        out_shape=jax.ShapeDtypeStruct((B, d_model, nq_pad), q.dtype),
        grid_spec=pltpu.PrefetchScalarGridSpec(
            num_scalar_prefetch=0,
            grid=(B, n_qt),
            in_specs=[
                pl.BlockSpec((1, d_model, tq), lambda b, t: (b, 0, t)),
                pl.BlockSpec((1, d_model, nk_pad), lambda b, t: (b, 0, 0)),
                pl.BlockSpec((1, d_model, nk_pad), lambda b, t: (b, 0, 0)),
                _full(wq_s.shape), _full(bq_s.shape),
                _full(wk_s.shape), _full(bk_s.shape),
                _full(wv_s.shape), _full(bv_s.shape),
                _full(wmt.shape), _full(bm_col.shape),
            ],
            out_specs=pl.BlockSpec((1, d_model, tq), lambda b, t: (b, 0, t)),
            scratch_shapes=[
                pltpu.VMEM((d_model, tq), scr_dt),       # Q tile (head-major rows)
                pltpu.VMEM((d_model, nk_pad), scr_dt),   # K slab (per batch)
                pltpu.VMEM((d_model, nk_pad), scr_dt),   # V slab (per batch)
                pltpu.VMEM((d_model, tq), jnp.float32),  # merge accumulator
            ]),
        compiler_params=pltpu.CompilerParams(
            # TODO(synk): for B < num TensorCores (v7x megacore) also shard the
            # query-tile axis across cores (replicating the qt==0 K/V proj).
            dimension_semantics=("parallel", "arbitrary"),
            vmem_limit_bytes=int(vmem_limit)),
        cost_estimate=pl.CostEstimate(flops=flops,
                                      transcendentals=transcendentals,
                                      bytes_accessed=bytes_accessed),
    )(qp, kp, vp, wq_s, bq_s, wk_s, bk_s, wv_s, bv_s, wmt, bm_col)

    # Kernel already emits channel-major (B, d_model, Nq_pad); just trim.
    return out_pad[:, :, :nq]


def reference_forward(q, k, v, params, num_heads):
    """Pure-JAX mirror of the PyTorch module (for validation)."""
    Wq, bq, Wk, bk, Wv, bv, Wm, bm = params
    B, d_model, nq = q.shape
    head_dim = d_model // num_heads

    def conv1x1(W, b, x):  # x: (B, C, N)
        return jnp.einsum('oc,bcn->bon', W, x) + b[None, :, None]

    qp = conv1x1(Wq, bq, q).reshape(B, head_dim, num_heads, nq)
    kp = conv1x1(Wk, bk, k).reshape(B, head_dim, num_heads, -1)
    vp = conv1x1(Wv, bv, v).reshape(B, head_dim, num_heads, -1)
    scores = jnp.einsum('bdhn,bdhm->bhnm', qp, kp) / (head_dim ** 0.5)
    prob = jax.nn.softmax(scores, axis=-1)
    x = jnp.einsum('bhnm,bdhm->bdhn', prob, vp)
    return conv1x1(Wm, bm, x.reshape(B, head_dim * num_heads, nq))


if __name__ == "__main__":
    B, num_heads, d_model = 2, 4, 64     # head_dim = 16 (bf16 sublane-aligned)
    nq, nkv = 16, 24                     # cross-attention shapes, exercise key mask

    key = jax.random.PRNGKey(0)
    ks = jax.random.split(key, 11)
    Wq = jax.random.normal(ks[0], (d_model, d_model), jnp.float32) * 0.1
    bq = jax.random.normal(ks[1], (d_model,), jnp.float32) * 0.1
    Wk = jax.random.normal(ks[2], (d_model, d_model), jnp.float32) * 0.1
    bk = jax.random.normal(ks[3], (d_model,), jnp.float32) * 0.1
    Wv = jax.random.normal(ks[4], (d_model, d_model), jnp.float32) * 0.1
    bv = jax.random.normal(ks[5], (d_model,), jnp.float32) * 0.1
    Wm = jax.random.normal(ks[6], (d_model, d_model), jnp.float32) * 0.1
    bm = jax.random.normal(ks[7], (d_model,), jnp.float32) * 0.1
    params = (Wq, bq, Wk, bk, Wv, bv, Wm, bm)

    q = jax.random.normal(ks[8], (B, d_model, nq), jnp.float32)
    k = jax.random.normal(ks[9], (B, d_model, nkv), jnp.float32)
    v = jax.random.normal(ks[10], (B, d_model, nkv), jnp.float32)

    ref = reference_forward(q, k, v, params, num_heads)

    # f32 compute path: tight numerical check.
    out_f32 = multi_headed_attention(q, k, v, params, num_heads,
                                     compute_dtype=jnp.float32)
    out_f32 = jax.block_until_ready(out_f32)
    assert out_f32.shape == (B, d_model, nq)
    assert bool(jnp.allclose(out_f32, ref, atol=5e-4, rtol=5e-4)), \
        "f32 kernel mismatch vs reference"

    # bf16 MXU/EUP path (default / performance config): looser tolerance.
    prepared = prepare_params(params, num_heads, compute_dtype=jnp.bfloat16)
    out_bf16 = multi_headed_attention(q, k, v, params, num_heads,
                                      compute_dtype=jnp.bfloat16,
                                      prepared=prepared)
    out_bf16 = jax.block_until_ready(out_bf16)
    assert out_bf16.shape == (B, d_model, nq)
    assert bool(jnp.allclose(out_bf16, ref, atol=5e-2, rtol=5e-2)), \
        "bf16 kernel mismatch vs reference"

    print("KERNEL_OK")
</pallas_src>

<mosaic_0001>
module attributes {stable_mosaic.version = 11 : i64} {
  func.func @_mha_kernel(%arg0: i32, %arg1: i32, %arg2: memref<1x64x128xf32, #tpu.memory_space<vmem>>, %arg3: memref<1x64x128xf32, #tpu.memory_space<vmem>>, %arg4: memref<1x64x128xf32, #tpu.memory_space<vmem>>, %arg5: memref<64x64xf32, #tpu.memory_space<vmem>>, %arg6: memref<64x1xf32, #tpu.memory_space<vmem>>, %arg7: memref<64x64xf32, #tpu.memory_space<vmem>>, %arg8: memref<64x1xf32, #tpu.memory_space<vmem>>, %arg9: memref<64x64xf32, #tpu.memory_space<vmem>>, %arg10: memref<64x1xf32, #tpu.memory_space<vmem>>, %arg11: memref<64x64xf32, #tpu.memory_space<vmem>>, %arg12: memref<64x1xf32, #tpu.memory_space<vmem>>, %arg13: memref<1x64x128xf32, #tpu.memory_space<vmem>>, %arg14: memref<64x128xf32, #tpu.memory_space<vmem>>, %arg15: memref<64x128xf32, #tpu.memory_space<vmem>>, %arg16: memref<64x128xf32, #tpu.memory_space<vmem>>, %arg17: memref<64x128xf32, #tpu.memory_space<vmem>>) attributes {dimension_semantics = [#tpu.dimension_semantics<parallel>, #tpu.dimension_semantics<arbitrary>], iteration_bounds = array<i64: 2, 1>, scalar_prefetch = 0 : i64, scratch_operands = 4 : i64, tpu.core_type = #tpu.core_type<tc>, window_params = [{transform_indices = @transform_0, window_bounds = array<i64: 1, 64, 128>}, {transform_indices = @transform_1, window_bounds = array<i64: 1, 64, 128>}, {transform_indices = @transform_2, window_bounds = array<i64: 1, 64, 128>}, {pipeline_mode = #tpu.pipeline_mode<synchronous>, transform_indices = @transform_3, window_bounds = array<i64: 64, 64>}, {pipeline_mode = #tpu.pipeline_mode<synchronous>, transform_indices = @transform_4, window_bounds = array<i64: 64, 1>}, {pipeline_mode = #tpu.pipeline_mode<synchronous>, transform_indices = @transform_5, window_bounds = array<i64: 64, 64>}, {pipeline_mode = #tpu.pipeline_mode<synchronous>, transform_indices = @transform_6, window_bounds = array<i64: 64, 1>}, {pipeline_mode = #tpu.pipeline_mode<synchronous>, transform_indices = @transform_7, window_bounds = array<i64: 64, 64>}, {pipeline_mode = #tpu.pipeline_mode<synchronous>, transform_indices = @transform_8, window_bounds = array<i64: 64, 1>}, {pipeline_mode = #tpu.pipeline_mode<synchronous>, transform_indices = @transform_9, window_bounds = array<i64: 64, 64>}, {pipeline_mode = #tpu.pipeline_mode<synchronous>, transform_indices = @transform_10, window_bounds = array<i64: 64, 1>}, {transform_indices = @transform_11, window_bounds = array<i64: 1, 64, 128>}]} {
    %c0_i32 = arith.constant 0 : i32
    %0 = arith.cmpi eq, %arg1, %c0_i32 : i32
    %1 = arith.extui %0 : i1 to i32
    %c0_i32_0 = arith.constant 0 : i32
    %2 = arith.cmpi ne, %1, %c0_i32_0 : i32
    scf.if %2 {
      %c0_23 = arith.constant 0 : index
      %c0_24 = arith.constant 0 : index
      %27 = vector.load %arg7[%c0_23, %c0_24] : memref<64x64xf32, #tpu.memory_space<vmem>>, vector<64x64xf32>
      %c0_25 = arith.constant 0 : index
      %c0_26 = arith.constant 0 : index
      %c0_27 = arith.constant 0 : index
      %28 = vector.load %arg3[%c0_25, %c0_26, %c0_27] : memref<1x64x128xf32, #tpu.memory_space<vmem>>, vector<1x64x128xf32>
      %29 = vector.shape_cast %28 : vector<1x64x128xf32> to vector<64x128xf32>
      %cst_28 = arith.constant dense<0.000000e+00> : vector<64x128xf32>
      %30 = tpu.matmul %27, %29, %cst_28 {dimension_numbers = #tpu.dot_dimension_numbers<[1], [0], [0], [1], [0, 0, 1, 1], [], []>} : vector<64x64xf32>, vector<64x128xf32>, vector<64x128xf32> -> vector<64x128xf32>
      %c0_29 = arith.constant 0 : index
      %c0_30 = arith.constant 0 : index
      %31 = vector.load %arg8[%c0_29, %c0_30] : memref<64x1xf32, #tpu.memory_space<vmem>>, vector<64x1xf32>
      %32 = vector.broadcast %31 : vector<64x1xf32> to vector<64x128xf32>
      %33 = arith.addf %30, %32 : vector<64x128xf32>
      %c0_31 = arith.constant 0 : index
      %c0_32 = arith.constant 0 : index
      %34 = vector.load %arg15[%c0_31, %c0_32] : memref<64x128xf32, #tpu.memory_space<vmem>>, vector<64x128xf32>
      tpu.vector_store %arg15[%c0_31, %c0_32], %33 {strides = array<i32>} : memref<64x128xf32, #tpu.memory_space<vmem>>, vector<64x128xf32>,
      %c0_33 = arith.constant 0 : index
      %c0_34 = arith.constant 0 : index
      %35 = vector.load %arg9[%c0_33, %c0_34] : memref<64x64xf32, #tpu.memory_space<vmem>>, vector<64x64xf32>
      %c0_35 = arith.constant 0 : index
      %c0_36 = arith.constant 0 : index
      %c0_37 = arith.constant 0 : index
      %36 = vector.load %arg4[%c0_35, %c0_36, %c0_37] : memref<1x64x128xf32, #tpu.memory_space<vmem>>, vector<1x64x128xf32>
      %37 = vector.shape_cast %36 : vector<1x64x128xf32> to vector<64x128xf32>
      %cst_38 = arith.constant dense<0.000000e+00> : vector<64x128xf32>
      %38 = tpu.matmul %35, %37, %cst_38 {dimension_numbers = #tpu.dot_dimension_numbers<[1], [0], [0], [1], [0, 0, 1, 1], [], []>} : vector<64x64xf32>, vector<64x128xf32>, vector<64x128xf32> -> vector<64x128xf32>
      %c0_39 = arith.constant 0 : index
      %c0_40 = arith.constant 0 : index
      %39 = vector.load %arg10[%c0_39, %c0_40] : memref<64x1xf32, #tpu.memory_space<vmem>>, vector<64x1xf32>
      %40 = vector.broadcast %39 : vector<64x1xf32> to vector<64x128xf32>
      %41 = arith.addf %38, %40 : vector<64x128xf32>
      %c0_41 = arith.constant 0 : index
      %c0_42 = arith.constant 0 : index
      %42 = vector.load %arg16[%c0_41, %c0_42] : memref<64x128xf32, #tpu.memory_space<vmem>>, vector<64x128xf32>
      tpu.vector_store %arg16[%c0_41, %c0_42], %41 {strides = array<i32>} : memref<64x128xf32, #tpu.memory_space<vmem>>, vector<64x128xf32>,
    } else {
    }
    %c0 = arith.constant 0 : index
    %c0_1 = arith.constant 0 : index
    %3 = vector.load %arg5[%c0, %c0_1] : memref<64x64xf32, #tpu.memory_space<vmem>>, vector<64x64xf32>
    %c0_2 = arith.constant 0 : index
    %c0_3 = arith.constant 0 : index
    %c0_4 = arith.constant 0 : index
    %4 = vector.load %arg2[%c0_2, %c0_3, %c0_4] : memref<1x64x128xf32, #tpu.memory_space<vmem>>, vector<1x64x128xf32>
    %5 = vector.shape_cast %4 : vector<1x64x128xf32> to vector<64x128xf32>
    %cst = arith.constant dense<0.000000e+00> : vector<64x128xf32>
    %6 = tpu.matmul %3, %5, %cst {dimension_numbers = #tpu.dot_dimension_numbers<[1], [0], [0], [1], [0, 0, 1, 1], [], []>} : vector<64x64xf32>, vector<64x128xf32>, vector<64x128xf32> -> vector<64x128xf32>
    %c0_5 = arith.constant 0 : index
    %c0_6 = arith.constant 0 : index
    %7 = vector.load %arg6[%c0_5, %c0_6] : memref<64x1xf32, #tpu.memory_space<vmem>>, vector<64x1xf32>
    %8 = vector.broadcast %7 : vector<64x1xf32> to vector<64x128xf32>
    %9 = arith.addf %6, %8 : vector<64x128xf32>
    %c0_7 = arith.constant 0 : index
    %c0_8 = arith.constant 0 : index
    %10 = vector.load %arg14[%c0_7, %c0_8] : memref<64x128xf32, #tpu.memory_space<vmem>>, vector<64x128xf32>
    tpu.vector_store %arg14[%c0_7, %c0_8], %9 {strides = array<i32>} : memref<64x128xf32, #tpu.memory_space<vmem>>, vector<64x128xf32>,
    %cst_9 = arith.constant 0.000000e+00 : f32
    %11 = vector.broadcast %cst_9 : f32 to vector<64x128xf32>
    %c0_10 = arith.constant 0 : index
    %c0_11 = arith.constant 0 : index
    %12 = vector.load %arg17[%c0_10, %c0_11] : memref<64x128xf32, #tpu.memory_space<vmem>>, vector<64x128xf32>
    tpu.vector_store %arg17[%c0_10, %c0_11], %11 {strides = array<i32>} : memref<64x128xf32, #tpu.memory_space<vmem>>, vector<64x128xf32>,
    %13 = tpu.iota {dimensions = array<i32: 1>} : vector<1x128xi32>
    %c24_i32 = arith.constant 24 : i32
    %14 = vector.broadcast %c24_i32 : i32 to vector<1x128xi32>
    %15 = arith.cmpi slt, %13, %14 : vector<1x128xi32>
    %cst_12 = arith.constant 0.000000e+00 : f32
    %cst_13 = arith.constant -1.000000e+30 : f32
    %16 = vector.broadcast %cst_12 : f32 to vector<1x128xf32>
    %17 = vector.broadcast %cst_13 : f32 to vector<1x128xf32>
    %18 = arith.select %15, %16, %17 : vector<1x128xi1>, vector<1x128xf32>
    %c0_i32_14 = arith.constant 0 : i32
    %c4_i32 = arith.constant 4 : i32
    %19 = arith.addi %c0_i32_14, %c4_i32 : i32
    %c1_i32 = arith.constant 1 : i32
    scf.for %arg18 = %c0_i32_14 to %19 step %c1_i32  : i32 {
      %c1_i32_23 = arith.constant 1 : i32
      %27 = arith.muli %arg18, %c1_i32_23 : i32
      %c0_i32_24 = arith.constant 0 : i32
      %28 = arith.addi %c0_i32_24, %27 : i32
      %c16_i32 = arith.constant 16 : i32
      %29 = arith.muli %28, %c16_i32 : i32
      %30 = tpu.assume_multiple %29, 16 : i32
      %31 = arith.index_cast %30 : i32 to index
      %c0_25 = arith.constant 0 : index
      %32 = vector.load %arg14[%31, %c0_25] : memref<64x128xf32, #tpu.memory_space<vmem>>, vector<16x128xf32>
      %33 = arith.index_cast %30 : i32 to index
      %c0_26 = arith.constant 0 : index
      %34 = vector.load %arg15[%33, %c0_26] : memref<64x128xf32, #tpu.memory_space<vmem>>, vector<16x128xf32>
      %35 = arith.index_cast %30 : i32 to index
      %c0_27 = arith.constant 0 : index
      %36 = vector.load %arg16[%35, %c0_27] : memref<64x128xf32, #tpu.memory_space<vmem>>, vector<16x128xf32>
      %cst_28 = arith.constant dense<0.000000e+00> : vector<128x128xf32>
      %37 = tpu.matmul %32, %34, %cst_28 {dimension_numbers = #tpu.dot_dimension_numbers<[0], [0], [1], [1], [0, 1, 1, 1], [], []>} : vector<16x128xf32>, vector<16x128xf32>, vector<128x128xf32> -> vector<128x128xf32>
      %38 = vector.broadcast %18 : vector<1x128xf32> to vector<128x128xf32>
      %39 = arith.addf %37, %38 : vector<128x128xf32>
      %cst_29 = arith.constant dense<0xFF800000> : vector<128xf32>
      %40 = vector.multi_reduction <maximumf>, %39, %cst_29 [1] : vector<128x128xf32> to vector<128xf32>
      %41 = vector.shape_cast %40 : vector<128xf32> to vector<128x1xf32>
      %42 = vector.broadcast %41 : vector<128x1xf32> to vector<128x128xf32>
      %43 = arith.subf %39, %42 : vector<128x128xf32>
      %44 = math.exp %43 : vector<128x128xf32>
      %cst_30 = arith.constant dense<0.000000e+00> : vector<128xf32>
      %45 = vector.multi_reduction <add>, %44, %cst_30 [1] : vector<128x128xf32> to vector<128xf32>
      %46 = vector.shape_cast %45 : vector<128xf32> to vector<128x1xf32>
      %cst_31 = arith.constant dense<0.000000e+00> : vector<128x16xf32>
      %47 = tpu.matmul %44, %36, %cst_31 {dimension_numbers = #tpu.dot_dimension_numbers<[1], [1], [0], [0], [0, 0, 1, 0], [], []>} : vector<128x128xf32>, vector<16x128xf32>, vector<128x16xf32> -> vector<128x16xf32>
      %48 = tpu.reciprocal %46 : vector<128x1xf32> -> vector<128x1xf32>
      %49 = vector.broadcast %48 : vector<128x1xf32> to vector<128x16xf32>
      %50 = arith.mulf %47, %49 : vector<128x16xf32>
      %51 = arith.index_cast %30 : i32 to index
      %c0_32 = arith.constant 0 : index
      %52 = vector.load %arg11[%51, %c0_32] : memref<64x64xf32, #tpu.memory_space<vmem>>, vector<16x64xf32>
      %c0_33 = arith.constant 0 : index
      %c0_34 = arith.constant 0 : index
      %53 = vector.load %arg17[%c0_33, %c0_34] : memref<64x128xf32, #tpu.memory_space<vmem>>, vector<64x128xf32>
      %cst_35 = arith.constant dense<0.000000e+00> : vector<64x128xf32>
      %54 = tpu.matmul %52, %50, %cst_35 {dimension_numbers = #tpu.dot_dimension_numbers<[0], [1], [1], [0], [0, 1, 1, 0], [], []>} : vector<16x64xf32>, vector<128x16xf32>, vector<64x128xf32> -> vector<64x128xf32>
      %55 = arith.addf %53, %54 : vector<64x128xf32>
      %c0_36 = arith.constant 0 : index
      %c0_37 = arith.constant 0 : index
      %56 = vector.load %arg17[%c0_36, %c0_37] : memref<64x128xf32, #tpu.memory_space<vmem>>, vector<64x128xf32>
      tpu.vector_store %arg17[%c0_36, %c0_37], %55 {strides = array<i32>} : memref<64x128xf32, #tpu.memory_space<vmem>>, vector<64x128xf32>,
    }
    %c4_i32_15 = arith.constant 4 : i32
    %c0_16 = arith.constant 0 : index
    %c0_17 = arith.constant 0 : index
    %20 = vector.load %arg17[%c0_16, %c0_17] : memref<64x128xf32, #tpu.memory_space<vmem>>, vector<64x128xf32>
    %c0_18 = arith.constant 0 : index
    %c0_19 = arith.constant 0 : index
    %21 = vector.load %arg12[%c0_18, %c0_19] : memref<64x1xf32, #tpu.memory_space<vmem>>, vector<64x1xf32>
    %22 = vector.broadcast %21 : vector<64x1xf32> to vector<64x128xf32>
    %23 = arith.addf %20, %22 : vector<64x128xf32>
    %c0_20 = arith.constant 0 : index
    %c0_21 = arith.constant 0 : index
    %c0_22 = arith.constant 0 : index
    %24 = vector.load %arg13[%c0_20, %c0_21, %c0_22] : memref<1x64x128xf32, #tpu.memory_space<vmem>>, vector<1x64x128xf32>
    %25 = vector.shape_cast %24 : vector<1x64x128xf32> to vector<64x128xf32>
    %26 = vector.shape_cast %23 : vector<64x128xf32> to vector<1x64x128xf32>
    tpu.vector_store %arg13[%c0_20, %c0_21, %c0_22], %26 {strides = array<i32>} : memref<1x64x128xf32, #tpu.memory_space<vmem>>, vector<1x64x128xf32>,
    return
  }
  func.func @transform_0(%arg0: i32, %arg1: i32) -> (i32, i32, i32) {
    %c0_i32 = arith.constant 0 : i32
    %c0_i32_0 = arith.constant 0 : i32
    return %arg0, %c0_i32, %arg1 : i32, i32, i32
  }
  func.func @transform_1(%arg0: i32, %arg1: i32) -> (i32, i32, i32) {
    %c0_i32 = arith.constant 0 : i32
    %c0_i32_0 = arith.constant 0 : i32
    %c0_i32_1 = arith.constant 0 : i32
    return %arg0, %c0_i32, %c0_i32_0 : i32, i32, i32
  }
  func.func @transform_2(%arg0: i32, %arg1: i32) -> (i32, i32, i32) {
    %c0_i32 = arith.constant 0 : i32
    %c0_i32_0 = arith.constant 0 : i32
    %c0_i32_1 = arith.constant 0 : i32
    return %arg0, %c0_i32, %c0_i32_0 : i32, i32, i32
  }
  func.func @transform_3(%arg0: i32, %arg1: i32) -> (i32, i32) {
    %c0_i32 = arith.constant 0 : i32
    %c0_i32_0 = arith.constant 0 : i32
    %c0_i32_1 = arith.constant 0 : i32
    return %c0_i32, %c0_i32_0 : i32, i32
  }
  func.func @transform_4(%arg0: i32, %arg1: i32) -> (i32, i32) {
    %c0_i32 = arith.constant 0 : i32
    %c0_i32_0 = arith.constant 0 : i32
    %c0_i32_1 = arith.constant 0 : i32
    return %c0_i32, %c0_i32_0 : i32, i32
  }
  func.func @transform_5(%arg0: i32, %arg1: i32) -> (i32, i32) {
    %c0_i32 = arith.constant 0 : i32
    %c0_i32_0 = arith.constant 0 : i32
    %c0_i32_1 = arith.constant 0 : i32
    return %c0_i32, %c0_i32_0 : i32, i32
  }
  func.func @transform_6(%arg0: i32, %arg1: i32) -> (i32, i32) {
    %c0_i32 = arith.constant 0 : i32
    %c0_i32_0 = arith.constant 0 : i32
    %c0_i32_1 = arith.constant 0 : i32
    return %c0_i32, %c0_i32_0 : i32, i32
  }
  func.func @transform_7(%arg0: i32, %arg1: i32) -> (i32, i32) {
    %c0_i32 = arith.constant 0 : i32
    %c0_i32_0 = arith.constant 0 : i32
    %c0_i32_1 = arith.constant 0 : i32
    return %c0_i32, %c0_i32_0 : i32, i32
  }
  func.func @transform_8(%arg0: i32, %arg1: i32) -> (i32, i32) {
    %c0_i32 = arith.constant 0 : i32
    %c0_i32_0 = arith.constant 0 : i32
    %c0_i32_1 = arith.constant 0 : i32
    return %c0_i32, %c0_i32_0 : i32, i32
  }
  func.func @transform_9(%arg0: i32, %arg1: i32) -> (i32, i32) {
    %c0_i32 = arith.constant 0 : i32
    %c0_i32_0 = arith.constant 0 : i32
    %c0_i32_1 = arith.constant 0 : i32
    return %c0_i32, %c0_i32_0 : i32, i32
  }
  func.func @transform_10(%arg0: i32, %arg1: i32) -> (i32, i32) {
    %c0_i32 = arith.constant 0 : i32
    %c0_i32_0 = arith.constant 0 : i32
    %c0_i32_1 = arith.constant 0 : i32
    return %c0_i32, %c0_i32_0 : i32, i32
  }
  func.func @transform_11(%arg0: i32, %arg1: i32) -> (i32, i32, i32) {
    %c0_i32 = arith.constant 0 : i32
    %c0_i32_0 = arith.constant 0 : i32
    return %arg0, %c0_i32, %arg1 : i32, i32, i32
  }
}

</mosaic_0001>

<llo_original>
// kernel: tpu_custom_call.1
$region0: #{tpu_custom_call.1}
  #allocation0 [shape = 'u32[]', space=smem, size = 0x4, offset = 0x4, fixed_abs, tag = 'smem constant byte address 0x4 - core index']
  #allocation1 [shape = 'u32[144,128]{1,0:T(1,128)}', space=vmem, size = 0x12000, scoped, tag = 'internal scratch']
  #allocation2 [shape = 'f32[64,128]{1,0:T(8,128)}', space=vmem, size = 0x8000, scoped, tag = 'scratch operand']
  #allocation3 [shape = 'f32[64,128]{1,0:T(8,128)}', space=vmem, size = 0x8000, scoped, tag = 'scratch operand']
  #allocation4 [shape = 'f32[64,128]{1,0:T(8,128)}', space=vmem, size = 0x8000, scoped, tag = 'scratch operand']
  #allocation5 [shape = 'f32[64,128]{1,0:T(8,128)}', space=vmem, size = 0x8000, scoped, tag = 'scratch operand']
  %s0 = inlined_call_operand.vmem [shape: f32[2,64,128], index: 0, kind: input, shape index: {}]
  %s1 = inlined_call_operand.vmem [shape: f32[2,64,128], index: 1, kind: input, shape index: {}]
  %s2 = inlined_call_operand.hbm [shape: f32[2,64,128], index: 2, kind: input, shape index: {}]
  %s3 = inlined_call_operand.hbm [shape: f32[64,64], index: 3, kind: input, shape index: {}]
  %s4 = inlined_call_operand.vmem [shape: f32[64,1], index: 4, kind: input, shape index: {}]
  %s5 = inlined_call_operand.hbm [shape: f32[64,64], index: 5, kind: input, shape index: {}]
  %s6 = inlined_call_operand.vmem [shape: f32[64,1], index: 6, kind: input, shape index: {}]
  %s7 = inlined_call_operand.hbm [shape: f32[64,64], index: 7, kind: input, shape index: {}]
  %s8 = inlined_call_operand.vmem [shape: f32[64,1], index: 8, kind: input, shape index: {}]
  %s9 = inlined_call_operand.hbm [shape: f32[64,64], index: 9, kind: input, shape index: {}]
  %s10 = inlined_call_operand.vmem [shape: f32[64,1], index: 10, kind: input, shape index: {}]
  %s11 = inlined_call_operand.hbm [shape: f32[2,64,128], index: 11, kind: output, shape index: {}]
  %s12 = sld [smem:[#allocation0]]
  $region108: #{tpu_custom_call.1} parent=0
    _
  %s14 = ssub.s32 1, %s12
  %s15 = scalar_select 0, %s14, %s12
  $region1: #{tpu_custom_call.1} parent=0
    #allocation6 [shape = 'u8[65536]{0}', space=vmem, size = 0x10000, scoped, tag = 'input window, operand 2']
    #allocation7 [shape = 's32[2]{0}', space=sflag, size = 0x8, scoped, tag = 'scoped memory for tpu_custom_call.1']
    #allocation8 [shape = 's32[2]{0}', space=sflag, size = 0x8, scoped, tag = 'scoped memory for tpu_custom_call.1']
    #allocation9 [shape = 'u8[32768]{0}', space=vmem, size = 0x8000, scoped, tag = 'input window, operand 3, single buffered']
    #allocation10 [shape = 's32[1]{0}', space=sflag, size = 0x4, scoped, tag = 'scoped memory for tpu_custom_call.1']
    #allocation11 [shape = 'u8[32768]{0}', space=vmem, size = 0x8000, scoped, tag = 'input window, operand 5, single buffered']
    #allocation12 [shape = 'u8[32768]{0}', space=vmem, size = 0x8000, scoped, tag = 'input window, operand 7, single buffered']
    #allocation13 [shape = 's32[1]{0}', space=sflag, size = 0x4, scoped, tag = 'scoped memory for tpu_custom_call.1']
    #allocation14 [shape = 'u8[32768]{0}', space=vmem, size = 0x8000, scoped, tag = 'input window, operand 9, single buffered']
    #allocation15 [shape = 'u8[65536]{0}', space=vmem, size = 0x10000, scoped, tag = 'output window, operand 0']
    %16 = vsyncpa [#allocation7], 0
    %s17 = scalar_lea.sflag [#allocation7], 1
    %18 = vsyncpa %s17, 0
    %19 = vsyncpa [#allocation10], 0
    %20 = vsyncpa [#allocation13], 0
    %21 = vsyncpa [#allocation8], 0
    %s22 = scalar_lea.sflag [#allocation8], 1
    %23 = vsyncpa %s22, 0
    loop: start=0, step=1, limit=4
    $region2: #{tpu_custom_call.1} parent=1 // loop_pre_header
      _
    $region3: #{tpu_custom_call.1} parent=1 // loop_header
      %s25 = sphi 0, %s29
      %p26 = scmp.ge.s32.totalorder %s25, 4
      %s32 = sphi 0, %s44
      %s33 = sphi 0, %s40
      %s34 = sphi 0, %s32
      %s35 = sphi 0, %s33
      %s36 = sphi 0, %s34
      %s37 = sphi 0, %s35
      %s49 = sphi 0, %s51
      %s52 = sphi 0, %s49
      %s53 = sphi 0, %s52
      %s69 = sphi 0, %s53
      %s75 = sphi 0, %s77
      %s78 = sphi 0, %s75
      %s79 = sphi 0, %s78
      %s95 = sphi 0, %s79
      %s101 = sphi 0, %s103
      %s104 = sphi 0, %s101
      %s105 = sphi 0, %s104
      %s121 = sphi 0, %s105
      %s125 = sphi 0, %s125
      %s127 = sphi 0, %s125
      %s128 = sphi 0, %s127
      %s142 = sphi 0, %s128
      %s146 = sphi 0, %s146
      %s148 = sphi 0, %s146
      %s149 = sphi 0, %s148
      %s163 = sphi 0, %s149
      %s167 = sphi 0, %s167
      %s169 = sphi 0, %s167
      %s170 = sphi 0, %s169
      %s184 = sphi 0, %s170
      %s188 = sphi 0, %s188
      %s190 = sphi 0, %s188
      %s191 = sphi 0, %s190
      %s205 = sphi 0, %s191
      %s209 = sphi 0, %s209
      %s211 = sphi 0, %s209
      %s212 = sphi 0, %s211
      %s226 = sphi 0, %s212
      %s230 = sphi 0, %s230
      %s232 = sphi 0, %s230
      %s233 = sphi 0, %s232
      %s247 = sphi 0, %s233
      %s251 = sphi 0, %s251
      %s253 = sphi 0, %s251
      %s254 = sphi 0, %s253
      %s268 = sphi 0, %s254
      %s272 = sphi 0, %s272
      %s274 = sphi 0, %s272
      %s275 = sphi 0, %s274
      %s289 = sphi 0, %s275
      %s297 = sphi 0, %s299
      %s300 = sphi 0, %s297
      %s301 = sphi 0, %s300
      %s317 = sphi 0, %s301
    $region4: #{tpu_custom_call.1} parent=1 // loop_header_branch
      %28 = sbr.rel (%p26) target = $region8
    $region5: #{tpu_custom_call.1} parent=1 // loop_body
      %s30 = ssub.s32 %s25, 1
      %s31 = ssub.s32 %s25, 2
      %s38 = sadd.s32 1, %s33
      %p39 = scmp.ge.s32.totalorder %s38, 1
      %s40 = scalar_select %p39, 0, %s38
      %s41 = sadd.s32 1, %s32
      %s42 = scalar_select %p39, %s41, %s32
      %p43 = scmp.ge.s32.totalorder %s42, 2
      %s44 = scalar_select %p43, 0, %s42
      %s45 = ssub.s32 %s32, %s44
      %s46 = ssub.s32 %s33, %s40
      %s47 = sor.u32 %s45, %s46
      %p48 = scmp.eq.s32.totalorder %s47, 0
      %s50 = sadd.s32 %s49, 1
      %s51 = scalar_select %p48, %s49, %s50
      %p54 = pneg %p48
      %p55 = scmp.eq.s32.totalorder %s25, 1
      %p56 = por %p54, %p55
      %p57 = scmp.ne.s32.totalorder %s49, %s52
      %p58 = scmp.eq.s32.totalorder %s25, 0
      %p59 = por %p57, %p58
      %p60 = scmp.ne.s32.totalorder %s49, %s52
      %p61 = scmp.eq.s32.totalorder %s30, 1
      %p62 = por %p60, %p61
      %p63 = scmp.ne.s32.totalorder %s52, %s53
      %p64 = scmp.eq.s32.totalorder %s30, 0
      %p65 = por %p63, %p64
      %p66 = scmp.ne.s32.totalorder %s52, %s53
      %p67 = scmp.eq.s32.totalorder %s31, 1
      %p68 = por %p66, %p67
      %p70 = scmp.ne.s32.totalorder %s53, %s69
      %p71 = scmp.eq.s32.totalorder %s31, 0
      %p72 = por %p70, %p71
      %s73 = ssub.s32 %s32, %s44
      %p74 = scmp.eq.s32.totalorder %s73, 0
      %s76 = sadd.s32 %s75, 1
      %s77 = scalar_select %p74, %s75, %s76
      %p80 = pneg %p74
      %p81 = scmp.eq.s32.totalorder %s25, 1
      %p82 = por %p80, %p81
      %p83 = scmp.ne.s32.totalorder %s75, %s78
      %p84 = scmp.eq.s32.totalorder %s25, 0
      %p85 = por %p83, %p84
      %p86 = scmp.ne.s32.totalorder %s75, %s78
      %p87 = scmp.eq.s32.totalorder %s30, 1
      %p88 = por %p86, %p87
      %p89 = scmp.ne.s32.totalorder %s78, %s79
      %p90 = scmp.eq.s32.totalorder %s30, 0
      %p91 = por %p89, %p90
      %p92 = scmp.ne.s32.totalorder %s78, %s79
      %p93 = scmp.eq.s32.totalorder %s31, 1
      %p94 = por %p92, %p93
      %p96 = scmp.ne.s32.totalorder %s79, %s95
      %p97 = scmp.eq.s32.totalorder %s31, 0
      %p98 = por %p96, %p97
      %s99 = ssub.s32 %s32, %s44
      %p100 = scmp.eq.s32.totalorder %s99, 0
      %s102 = sadd.s32 %s101, 1
      %s103 = scalar_select %p100, %s101, %s102
      %p106 = pneg %p100
      %p107 = scmp.eq.s32.totalorder %s25, 1
      %p108 = por %p106, %p107
      %p109 = scmp.ne.s32.totalorder %s101, %s104
      %p110 = scmp.eq.s32.totalorder %s25, 0
      %p111 = por %p109, %p110
      %p112 = scmp.ne.s32.totalorder %s101, %s104
      %p113 = scmp.eq.s32.totalorder %s30, 1
      %p114 = por %p112, %p113
      %p115 = scmp.ne.s32.totalorder %s104, %s105
      %p116 = scmp.eq.s32.totalorder %s30, 0
      %p117 = por %p115, %p116
      %p118 = scmp.ne.s32.totalorder %s104, %s105
      %p119 = scmp.eq.s32.totalorder %s31, 1
      %p120 = por %p118, %p119
      %p122 = scmp.ne.s32.totalorder %s105, %s121
      %p123 = scmp.eq.s32.totalorder %s31, 0
      %p124 = por %p122, %p123
      %s126 = sadd.s32 %s125, 1
      %p129 = scmp.eq.s32.totalorder %s25, 1
      %p130 = scmp.ne.s32.totalorder %s125, %s127
      %p131 = scmp.eq.s32.totalorder %s25, 0
      %p132 = por %p130, %p131
      %p133 = scmp.ne.s32.totalorder %s125, %s127
      %p134 = scmp.eq.s32.totalorder %s30, 1
      %p135 = por %p133, %p134
      %p136 = scmp.ne.s32.totalorder %s127, %s128
      %p137 = scmp.eq.s32.totalorder %s30, 0
      %p138 = por %p136, %p137
      %p139 = scmp.ne.s32.totalorder %s127, %s128
      %p140 = scmp.eq.s32.totalorder %s31, 1
      %p141 = por %p139, %p140
      %p143 = scmp.ne.s32.totalorder %s128, %s142
      %p144 = scmp.eq.s32.totalorder %s31, 0
      %p145 = por %p143, %p144
      %s147 = sadd.s32 %s146, 1
      %p150 = scmp.eq.s32.totalorder %s25, 1
      %p151 = scmp.ne.s32.totalorder %s146, %s148
      %p152 = scmp.eq.s32.totalorder %s25, 0
      %p153 = por %p151, %p152
      %p154 = scmp.ne.s32.totalorder %s146, %s148
      %p155 = scmp.eq.s32.totalorder %s30, 1
      %p156 = por %p154, %p155
      %p157 = scmp.ne.s32.totalorder %s148, %s149
      %p158 = scmp.eq.s32.totalorder %s30, 0
      %p159 = por %p157, %p158
      %p160 = scmp.ne.s32.totalorder %s148, %s149
      %p161 = scmp.eq.s32.totalorder %s31, 1
      %p162 = por %p160, %p161
      %p164 = scmp.ne.s32.totalorder %s149, %s163
      %p165 = scmp.eq.s32.totalorder %s31, 0
      %p166 = por %p164, %p165
      %s168 = sadd.s32 %s167, 1
      %p171 = scmp.eq.s32.totalorder %s25, 1
      %p172 = scmp.ne.s32.totalorder %s167, %s169
      %p173 = scmp.eq.s32.totalorder %s25, 0
      %p174 = por %p172, %p173
      %p175 = scmp.ne.s32.totalorder %s167, %s169
      %p176 = scmp.eq.s32.totalorder %s30, 1
      %p177 = por %p175, %p176
      %p178 = scmp.ne.s32.totalorder %s169, %s170
      %p179 = scmp.eq.s32.totalorder %s30, 0
      %p180 = por %p178, %p179
      %p181 = scmp.ne.s32.totalorder %s169, %s170
      %p182 = scmp.eq.s32.totalorder %s31, 1
      %p183 = por %p181, %p182
      %p185 = scmp.ne.s32.totalorder %s170, %s184
      %p186 = scmp.eq.s32.totalorder %s31, 0
      %p187 = por %p185, %p186
      %s189 = sadd.s32 %s188, 1
      %p192 = scmp.eq.s32.totalorder %s25, 1
      %p193 = scmp.ne.s32.totalorder %s188, %s190
      %p194 = scmp.eq.s32.totalorder %s25, 0
      %p195 = por %p193, %p194
      %p196 = scmp.ne.s32.totalorder %s188, %s190
      %p197 = scmp.eq.s32.totalorder %s30, 1
      %p198 = por %p196, %p197
      %p199 = scmp.ne.s32.totalorder %s190, %s191
      %p200 = scmp.eq.s32.totalorder %s30, 0
      %p201 = por %p199, %p200
      %p202 = scmp.ne.s32.totalorder %s190, %s191
      %p203 = scmp.eq.s32.totalorder %s31, 1
      %p204 = por %p202, %p203
      %p206 = scmp.ne.s32.totalorder %s191, %s205
      %p207 = scmp.eq.s32.totalorder %s31, 0
      %p208 = por %p206, %p207
      %s210 = sadd.s32 %s209, 1
      %p213 = scmp.eq.s32.totalorder %s25, 1
      %p214 = scmp.ne.s32.totalorder %s209, %s211
      %p215 = scmp.eq.s32.totalorder %s25, 0
      %p216 = por %p214, %p215
      %p217 = scmp.ne.s32.totalorder %s209, %s211
      %p218 = scmp.eq.s32.totalorder %s30, 1
      %p219 = por %p217, %p218
      %p220 = scmp.ne.s32.totalorder %s211, %s212
      %p221 = scmp.eq.s32.totalorder %s30, 0
      %p222 = por %p220, %p221
      %p223 = scmp.ne.s32.totalorder %s211, %s212
      %p224 = scmp.eq.s32.totalorder %s31, 1
      %p225 = por %p223, %p224
      %p227 = scmp.ne.s32.totalorder %s212, %s226
      %p228 = scmp.eq.s32.totalorder %s31, 0
      %p229 = por %p227, %p228
      %s231 = sadd.s32 %s230, 1
      %p234 = scmp.eq.s32.totalorder %s25, 1
      %p235 = scmp.ne.s32.totalorder %s230, %s232
      %p236 = scmp.eq.s32.totalorder %s25, 0
      %p237 = por %p235, %p236
      %p238 = scmp.ne.s32.totalorder %s230, %s232
      %p239 = scmp.eq.s32.totalorder %s30, 1
      %p240 = por %p238, %p239
      %p241 = scmp.ne.s32.totalorder %s232, %s233
      %p242 = scmp.eq.s32.totalorder %s30, 0
      %p243 = por %p241, %p242
      %p244 = scmp.ne.s32.totalorder %s232, %s233
      %p245 = scmp.eq.s32.totalorder %s31, 1
      %p246 = por %p244, %p245
      %p248 = scmp.ne.s32.totalorder %s233, %s247
      %p249 = scmp.eq.s32.totalorder %s31, 0
      %p250 = por %p248, %p249
      %s252 = sadd.s32 %s251, 1
      %p255 = scmp.eq.s32.totalorder %s25, 1
      %p256 = scmp.ne.s32.totalorder %s251, %s253
      %p257 = scmp.eq.s32.totalorder %s25, 0
      %p258 = por %p256, %p257
      %p259 = scmp.ne.s32.totalorder %s251, %s253
      %p260 = scmp.eq.s32.totalorder %s30, 1
      %p261 = por %p259, %p260
      %p262 = scmp.ne.s32.totalorder %s253, %s254
      %p263 = scmp.eq.s32.totalorder %s30, 0
      %p264 = por %p262, %p263
      %p265 = scmp.ne.s32.totalorder %s253, %s254
      %p266 = scmp.eq.s32.totalorder %s31, 1
      %p267 = por %p265, %p266
      %p269 = scmp.ne.s32.totalorder %s254, %s268
      %p270 = scmp.eq.s32.totalorder %s31, 0
      %p271 = por %p269, %p270
      %s273 = sadd.s32 %s272, 1
      %p276 = scmp.eq.s32.totalorder %s25, 1
      %p277 = scmp.ne.s32.totalorder %s272, %s274
      %p278 = scmp.eq.s32.totalorder %s25, 0
      %p279 = por %p277, %p278
      %p280 = scmp.ne.s32.totalorder %s272, %s274
      %p281 = scmp.eq.s32.totalorder %s30, 1
      %p282 = por %p280, %p281
      %p283 = scmp.ne.s32.totalorder %s274, %s275
      %p284 = scmp.eq.s32.totalorder %s30, 0
      %p285 = por %p283, %p284
      %p286 = scmp.ne.s32.totalorder %s274, %s275
      %p287 = scmp.eq.s32.totalorder %s31, 1
      %p288 = por %p286, %p287
      %p290 = scmp.ne.s32.totalorder %s275, %s289
      %p291 = scmp.eq.s32.totalorder %s31, 0
      %p292 = por %p290, %p291
      %s293 = ssub.s32 %s32, %s44
      %s294 = ssub.s32 %s33, %s40
      %s295 = sor.u32 %s293, %s294
      %p296 = scmp.eq.s32.totalorder %s295, 0
      %s298 = sadd.s32 %s297, 1
      %s299 = scalar_select %p296, %s297, %s298
      %p302 = pneg %p296
      %p303 = scmp.eq.s32.totalorder %s25, 1
      %p304 = por %p302, %p303
      %p305 = scmp.ne.s32.totalorder %s297, %s300
      %p306 = scmp.eq.s32.totalorder %s25, 0
      %p307 = por %p305, %p306
      %p308 = scmp.ne.s32.totalorder %s297, %s300
      %p309 = scmp.eq.s32.totalorder %s30, 1
      %p310 = por %p308, %p309
      %p311 = scmp.ne.s32.totalorder %s300, %s301
      %p312 = scmp.eq.s32.totalorder %s30, 0
      %p313 = por %p311, %p312
      %p314 = scmp.ne.s32.totalorder %s300, %s301
      %p315 = scmp.eq.s32.totalorder %s31, 1
      %p316 = por %p314, %p315
      %p318 = scmp.ne.s32.totalorder %s301, %s317
      %p319 = scmp.eq.s32.totalorder %s31, 0
      %p320 = por %p318, %p319
      %p321 = scmp.le.s32.totalorder 1, %s25
      %p322 = scmp.lt.s32.totalorder %s25, 3
      %p323 = pnand %p321, %p322
      %p324 = pneg %p323
      // Predicated region
      $region9: #{tpu_custom_call.1} parent=5 // pred_check
        _
      $region10: #{tpu_custom_call.1} parent=5 // pred_check_branch
        %326 = sbr.rel (%p323) target = $region12
      $region11: #{tpu_custom_call.1} parent=5 // pred_region
        %s327 = ssub.s32 %s25, 1
        // Predicated region
        $region13: #{tpu_custom_call.1} parent=11 // pred_check
          %p328 = pneg %p138
        $region14: #{tpu_custom_call.1} parent=11 // pred_check_branch
          %330 = sbr.rel (%p328) target = $region16
        $region15: #{tpu_custom_call.1} parent=11 // pred_region
          %s332 = ssub.s32 1024, 1024
          %333 = vsyncadd [#allocation10], %s332
          %s334 = sshll.u32 [#allocation9], 4
          %s335 = int_to_ptr.vmem [resolvable:$true] %s334
          %340 = dma.hbm_to_vmem [thread:$0]  %s3, 1024, %s335, [#allocation10], 128, 128, 8
        $region16: #{tpu_custom_call.1} parent=11 // pred_fallthru
          _
        // Predicated region
        $region17: #{tpu_custom_call.1} parent=11 // pred_check
          %p341 = pneg %p159
        $region18: #{tpu_custom_call.1} parent=11 // pred_check_branch
          %343 = sbr.rel (%p341) target = $region20
        $region19: #{tpu_custom_call.1} parent=11 // pred_region
          _
        $region20: #{tpu_custom_call.1} parent=11 // pred_fallthru
          _
        // Predicated region
        $region21: #{tpu_custom_call.1} parent=11 // pred_check
          %p344 = pneg %p180
        $region22: #{tpu_custom_call.1} parent=11 // pred_check_branch
          %346 = sbr.rel (%p344) target = $region24
        $region23: #{tpu_custom_call.1} parent=11 // pred_region
          %s348 = ssub.s32 1024, 1024
          %349 = vsyncadd [#allocation10], %s348
          %s350 = sshll.u32 [#allocation11], 4
          %s351 = int_to_ptr.vmem [resolvable:$true] %s350
          %356 = dma.hbm_to_vmem [thread:$0]  %s5, 1024, %s351, [#allocation10], 128, 128, 8
        $region24: #{tpu_custom_call.1} parent=11 // pred_fallthru
          _
        // Predicated region
        $region25: #{tpu_custom_call.1} parent=11 // pred_check
          %p357 = pneg %p201
        $region26: #{tpu_custom_call.1} parent=11 // pred_check_branch
          %359 = sbr.rel (%p357) target = $region28
        $region27: #{tpu_custom_call.1} parent=11 // pred_region
          _
        $region28: #{tpu_custom_call.1} parent=11 // pred_fallthru
          _
        // Predicated region
        $region29: #{tpu_custom_call.1} parent=11 // pred_check
          %p360 = pneg %p222
        $region30: #{tpu_custom_call.1} parent=11 // pred_check_branch
          %362 = sbr.rel (%p360) target = $region32
        $region31: #{tpu_custom_call.1} parent=11 // pred_region
          %s364 = ssub.s32 1024, 1024
          %365 = vsyncadd [#allocation13], %s364
          %s366 = sshll.u32 [#allocation12], 4
          %s367 = int_to_ptr.vmem [resolvable:$true] %s366
          %372 = dma.hbm_to_vmem [thread:$0]  %s7, 1024, %s367, [#allocation13], 128, 128, 8
        $region32: #{tpu_custom_call.1} parent=11 // pred_fallthru
          _
        // Predicated region
        $region33: #{tpu_custom_call.1} parent=11 // pred_check
          %p373 = pneg %p243
        $region34: #{tpu_custom_call.1} parent=11 // pred_check_branch
          %375 = sbr.rel (%p373) target = $region36
        $region35: #{tpu_custom_call.1} parent=11 // pred_region
          _
        $region36: #{tpu_custom_call.1} parent=11 // pred_fallthru
          _
        // Predicated region
        $region37: #{tpu_custom_call.1} parent=11 // pred_check
          %p376 = pneg %p264
        $region38: #{tpu_custom_call.1} parent=11 // pred_check_branch
          %378 = sbr.rel (%p376) target = $region40
        $region39: #{tpu_custom_call.1} parent=11 // pred_region
          %s380 = ssub.s32 1024, 1024
          %381 = vsyncadd [#allocation13], %s380
          %s382 = sshll.u32 [#allocation14], 4
          %s383 = int_to_ptr.vmem [resolvable:$true] %s382
          %388 = dma.hbm_to_vmem [thread:$0]  %s9, 1024, %s383, [#allocation13], 128, 128, 8
        $region40: #{tpu_custom_call.1} parent=11 // pred_fallthru
          _
        // Predicated region
        $region41: #{tpu_custom_call.1} parent=11 // pred_check
          %p389 = pneg %p285
        $region42: #{tpu_custom_call.1} parent=11 // pred_check_branch
          %391 = sbr.rel (%p389) target = $region44
        $region43: #{tpu_custom_call.1} parent=11 // pred_region
          _
        $region44: #{tpu_custom_call.1} parent=11 // pred_fallthru
          _
      $region12: #{tpu_custom_call.1} parent=5 // pred_fallthru
        _
      %p392 = scmp.lt.s32.totalorder %s25, 2
      // Predicated region
      $region45: #{tpu_custom_call.1} parent=5 // pred_check
        %p393 = pneg %p392
      $region46: #{tpu_custom_call.1} parent=5 // pred_check_branch
        %395 = sbr.rel (%p393) target = $region48
      $region47: #{tpu_custom_call.1} parent=5 // pred_region
        // Predicated region
        $region49: #{tpu_custom_call.1} parent=47 // pred_check
          %p396 = pneg %p59
        $region50: #{tpu_custom_call.1} parent=47 // pred_check_branch
          %398 = sbr.rel (%p396) target = $region52
        $region51: #{tpu_custom_call.1} parent=47 // pred_region
          %p399 = scmp.lt.s32.totalorder %s32, 1
          %s400 = scalar_select %p399, %s32, 1
          %p401 = scmp.lt.s32.totalorder %s33, 0
          %s402 = scalar_select %p401, %s33, 0
          %s403 = smul.addr %s400, 8
          %s404 = sadd.s32 %s402, %s403
          %s405 = smul.addr %s404, 8
          %s406 = scalar_lea.vmem %s0, %s405
        $region52: #{tpu_custom_call.1} parent=47 // pred_fallthru
          _
        // Predicated region
        $region53: #{tpu_custom_call.1} parent=47 // pred_check
          %p407 = pneg %p85
        $region54: #{tpu_custom_call.1} parent=47 // pred_check_branch
          %409 = sbr.rel (%p407) target = $region56
        $region55: #{tpu_custom_call.1} parent=47 // pred_region
          %p410 = scmp.lt.s32.totalorder %s32, 1
          %s411 = scalar_select %p410, %s32, 1
          %s412 = smul.addr %s411, 8
          %s413 = smul.addr %s412, 8
          %s414 = scalar_lea.vmem %s1, %s413
        $region56: #{tpu_custom_call.1} parent=47 // pred_fallthru
          _
        // Predicated region
        $region57: #{tpu_custom_call.1} parent=47 // pred_check
          %p415 = pneg %p111
        $region58: #{tpu_custom_call.1} parent=47 // pred_check_branch
          %417 = sbr.rel (%p415) target = $region60
        $region59: #{tpu_custom_call.1} parent=47 // pred_region
          %s418 = sand.u32 %s101, 1
          %s419 = scalar_lea.sflag [#allocation7], %s418
          %s420 = sand.u32 %s101, 1
          %s421 = smul.addr %s420, 64
          %s422 = scalar_lea.vmem [#allocation6], %s421
          %s424 = ssub.s32 1024, 1024
          %425 = vsyncadd %s419, %s424
          %s426 = smul.addr %s32, 8
          %s427 = smul.addr %s426, 128
          %s428 = scalar_lea.hbm %s2, %s427
          %s429 = sshll.u32 %s422, 4
          %s430 = int_to_ptr.vmem [resolvable:$true] %s429
          %435 = dma.hbm_to_vmem [thread:$0]  %s428, 1024, %s430, %s419, 128, 128, 8
        $region60: #{tpu_custom_call.1} parent=47 // pred_fallthru
          _
      $region48: #{tpu_custom_call.1} parent=5 // pred_fallthru
        _
      %p436 = scmp.le.s32.totalorder 1, %s25
      %p437 = scmp.lt.s32.totalorder %s25, 3
      %p438 = pnand %p436, %p437
      %p439 = pneg %p438
      // Predicated region
      $region61: #{tpu_custom_call.1} parent=5 // pred_check
        _
      $region62: #{tpu_custom_call.1} parent=5 // pred_check_branch
        %441 = sbr.rel (%p438) target = $region64
      $region63: #{tpu_custom_call.1} parent=5 // pred_region
        %s442 = ssub.s32 %s25, 1
        %s443 = sand.u32 %s104, 1
        %s444 = scalar_lea.sflag [#allocation7], %s443
        %s445 = sand.u32 %s104, 1
        %s446 = smul.addr %s445, 64
        %s447 = scalar_lea.vmem [#allocation6], %s446
        // Predicated region
        $region65: #{tpu_custom_call.1} parent=63 // pred_check
          %p448 = pneg %p117
        $region66: #{tpu_custom_call.1} parent=63 // pred_check_branch
          %450 = sbr.rel (%p448) target = $region68
        $region67: #{tpu_custom_call.1} parent=63 // pred_region
          %451 = dma.done %s444, 1024
        $region68: #{tpu_custom_call.1} parent=63 // pred_fallthru
          _
        // Predicated region
        $region69: #{tpu_custom_call.1} parent=63 // pred_check
          %p452 = pneg %p138
        $region70: #{tpu_custom_call.1} parent=63 // pred_check_branch
          %454 = sbr.rel (%p452) target = $region72
        $region71: #{tpu_custom_call.1} parent=63 // pred_region
          %455 = dma.done [#allocation10], 1024
        $region72: #{tpu_custom_call.1} parent=63 // pred_fallthru
          _
        // Predicated region
        $region73: #{tpu_custom_call.1} parent=63 // pred_check
          %p456 = pneg %p180
        $region74: #{tpu_custom_call.1} parent=63 // pred_check_branch
          %458 = sbr.rel (%p456) target = $region76
        $region75: #{tpu_custom_call.1} parent=63 // pred_region
          %459 = dma.done [#allocation10], 1024
        $region76: #{tpu_custom_call.1} parent=63 // pred_fallthru
          _
        // Predicated region
        $region77: #{tpu_custom_call.1} parent=63 // pred_check
          %p460 = pneg %p222
        $region78: #{tpu_custom_call.1} parent=63 // pred_check_branch
          %462 = sbr.rel (%p460) target = $region80
        $region79: #{tpu_custom_call.1} parent=63 // pred_region
          %463 = dma.done [#allocation13], 1024
        $region80: #{tpu_custom_call.1} parent=63 // pred_fallthru
          _
        // Predicated region
        $region81: #{tpu_custom_call.1} parent=63 // pred_check
          %p464 = pneg %p264
        $region82: #{tpu_custom_call.1} parent=63 // pred_check_branch
          %466 = sbr.rel (%p464) target = $region84
        $region83: #{tpu_custom_call.1} parent=63 // pred_region
          %467 = dma.done [#allocation13], 1024
        $region84: #{tpu_custom_call.1} parent=63 // pred_fallthru
          _
        %p468 = scmp.lt.s32.totalorder %s34, 1
        %s469 = scalar_select %p468, %s34, 1
        %p470 = scmp.lt.s32.totalorder %s35, 0
        %s471 = scalar_select %p470, %s35, 0
        %s472 = smul.addr %s469, 8
        %s473 = sadd.s32 %s471, %s472
        %s474 = smul.addr %s473, 8
        %s475 = scalar_lea.vmem %s0, %s474
        %p476 = pneg %p65
        %p477 = pneg %p62
        %p478 = scmp.lt.s32.totalorder %s34, 1
        %s479 = scalar_select %p478, %s34, 1
        %s480 = smul.addr %s479, 8
        %s481 = smul.addr %s480, 8
        %s482 = scalar_lea.vmem %s1, %s481
        %p483 = pneg %p91
        %p484 = pneg %p88
        %s485 = sand.u32 %s104, 1
        %s486 = scalar_lea.sflag [#allocation7], %s485
        %s487 = sand.u32 %s104, 1
        %s488 = smul.addr %s487, 64
        %s489 = scalar_lea.vmem [#allocation6], %s488
        %p490 = pneg %p117
        %p491 = pneg %p114
        %p492 = pneg %p138
        %p493 = pneg %p135
        %p494 = pneg %p159
        %p495 = pneg %p156
        %p496 = pneg %p180
        %p497 = pneg %p177
        %p498 = pneg %p201
        %p499 = pneg %p198
        %p500 = pneg %p222
        %p501 = pneg %p219
        %p502 = pneg %p243
        %p503 = pneg %p240
        %p504 = pneg %p264
        %p505 = pneg %p261
        %p506 = pneg %p285
        %p507 = pneg %p282
        %p508 = pneg %p313
        %p509 = pneg %p310
        %s510 = sand.u32 %s300, 1
        %s511 = scalar_lea.sflag [#allocation8], %s510
        %s512 = sand.u32 %s300, 1
        %s513 = smul.addr %s512, 64
        %s514 = scalar_lea.vmem [#allocation15], %s513
        %p515 = scmp.lt.s32.totalorder %s34, 1
        %s516 = scalar_select %p515, %s34, 1
        %p517 = scmp.lt.s32.totalorder %s35, 0
        %s518 = scalar_select %p517, %s35, 0
        %s519 = smul.addr %s516, 8
        %s520 = sadd.s32 %s518, %s519
        %s521 = smul.addr %s520, 8
        %s522 = scalar_lea.vmem %s0, %s521
        %p523 = scmp.lt.s32.totalorder %s34, 1
        %s524 = scalar_select %p523, %s34, 1
        %s525 = smul.addr %s524, 8
        %s526 = smul.addr %s525, 8
        %s527 = scalar_lea.vmem %s1, %s526
        %p528 = scmp.eq.s32.totalorder %s35, 0
        // Predicated region
        $region85: #{tpu_custom_call.1} parent=63 // pred_check
          %p529 = pneg %p528
        $region86: #{tpu_custom_call.1} parent=63 // pred_check_branch
          %531 = sbr.rel (%p529) target = $region88
        $region87: #{tpu_custom_call.1} parent=63 // pred_region
          %v532 = vld [vmem:[#allocation11] sm:$0xff]
          %v533 = vld [vmem:[#allocation11 + $0x8] sm:$0xff]
          %v534 = vld [vmem:[#allocation11 + $0x10] sm:$0xff]
          %v535 = vld [vmem:[#allocation11 + $0x18] sm:$0xff]
          %v536 = vld [vmem:[#allocation11 + $0x20] sm:$0xff]
          %v537 = vld [vmem:[#allocation11 + $0x28] sm:$0xff]
          %v538 = vld [vmem:[#allocation11 + $0x30] sm:$0xff]
          %v539 = vld [vmem:[#allocation11 + $0x38] sm:$0xff]
          %v540 = vld [vmem:[%s527] sm:$0xff]
          %v541 = vld [vmem:[%s527 + $0x8] sm:$0xff]
          %v542 = vld [vmem:[%s527 + $0x10] sm:$0xff]
          %v543 = vld [vmem:[%s527 + $0x18] sm:$0xff]
          %v544 = vld [vmem:[%s527 + $0x20] sm:$0xff]
          %v545 = vld [vmem:[%s527 + $0x28] sm:$0xff]
          %v546 = vld [vmem:[%s527 + $0x30] sm:$0xff]
          %v547 = vld [vmem:[%s527 + $0x38] sm:$0xff]
          %v548 = vld [vmem:[%s6] sm:$0xff]
          %v549 = vld [vmem:[%s6 + $0x8] sm:$0xff]
          %v550 = vld [vmem:[%s6 + $0x10] sm:$0xff]
          %v551 = vld [vmem:[%s6 + $0x18] sm:$0xff]
          %v552 = vld [vmem:[%s6 + $0x20] sm:$0xff]
          %v553 = vld [vmem:[%s6 + $0x28] sm:$0xff]
          %v554 = vld [vmem:[%s6 + $0x30] sm:$0xff]
          %v555 = vld [vmem:[%s6 + $0x38] sm:$0xff]
          %557 = vset.pattern.permute.xlu0 0
          %558 = vperm.xlu0 %557, %v548
          %v559 = vpop.permute.xlu0 %558
          %562 = vset.pattern.permute.xlu0 0
          %563 = vperm.xlu0 %562, %v549
          %v564 = vpop.permute.xlu0 %563
          %567 = vset.pattern.permute.xlu0 0
          %568 = vperm.xlu0 %567, %v550
          %v569 = vpop.permute.xlu0 %568
          %572 = vset.pattern.permute.xlu0 0
          %573 = vperm.xlu0 %572, %v551
          %v574 = vpop.permute.xlu0 %573
          %577 = vset.pattern.permute.xlu0 0
          %578 = vperm.xlu0 %577, %v552
          %v579 = vpop.permute.xlu0 %578
          %582 = vset.pattern.permute.xlu0 0
          %583 = vperm.xlu0 %582, %v553
          %v584 = vpop.permute.xlu0 %583
          %587 = vset.pattern.permute.xlu0 0
          %588 = vperm.xlu0 %587, %v554
          %v589 = vpop.permute.xlu0 %588
          %592 = vset.pattern.permute.xlu0 0
          %593 = vperm.xlu0 %592, %v555
          %v594 = vpop.permute.xlu0 %593
          %vm596 = vcmask 523264
          %v598 = vsel %vm596, %v532, 0
          %v601 = vsel %vm596, %v533, 0
          %v604 = vsel %vm596, %v534, 0
          %v607 = vsel %vm596, %v535, 0
          %v610 = vsel %vm596, %v536, 0
          %v613 = vsel %vm596, %v537, 0
          %v616 = vsel %vm596, %v538, 0
          %v619 = vsel %vm596, %v539, 0
          %621 = vmatprep.subr.mxu0 0.0
          %622 = vmatpush1.msra.mxu0 0.0
          %623 = vmatprep.subr.mxu0 0.0
          %624 = vmatpush1.msra.mxu0 0.0
          %625 = vmatprep.subr.mxu0 0.0
          %626 = vmatpush1.msra.mxu0 0.0
          %627 = vmatprep.subr.mxu0 0.0
          %628 = vmatpush1.msra.mxu0 0.0
          %629 = vmatprep.subr.mxu0 0.0
          %630 = vmatpush1.msra.mxu0 0.0
          %631 = vmatprep.subr.mxu0 0.0
          %632 = vmatpush1.msra.mxu0 0.0
          %633 = vmatprep.subr.mxu0 0.0
          %634 = vmatpush1.msra.mxu0 0.0
          %635 = vmatprep.subr.mxu0 0.0
          %636 = vmatpush1.msra.mxu0 0.0
          %637 = vmatprep.subr.mxu0 0.0
          %638 = vmatpush1.msra.mxu0 %v547
          %639 = vmatprep.subr.mxu0 0.0
          %640 = vmatpush1.msra.mxu0 %v546
          %641 = vmatprep.subr.mxu0 0.0
          %642 = vmatpush1.msra.mxu0 %v545
          %643 = vmatprep.subr.mxu0 0.0
          %644 = vmatpush1.msra.mxu0 %v544
          %645 = vmatprep.subr.mxu0 0.0
          %646 = vmatpush1.msra.mxu0 %v543
          %647 = vmatprep.subr.mxu0 0.0
          %648 = vmatpush1.msra.mxu0 %v542
          %649 = vmatprep.subr.mxu0 0.0
          %650 = vmatpush1.msra.mxu0 %v541
          %651 = vmatprep.subr.mxu0 0.0
          %652 = vmatpush1.msra.mxu0 %v540
          %653 = vmatprep.subr.mxu0 0.0
          %654 = vmatpush2.msra.mxu0 0.0
          %655 = vmatprep.subr.mxu0 0.0
          %656 = vmatpush2.msra.mxu0 0.0
          %657 = vmatprep.subr.mxu0 0.0
          %658 = vmatpush2.msra.mxu0 0.0
          %659 = vmatprep.subr.mxu0 0.0
          %660 = vmatpush2.msra.mxu0 0.0
          %661 = vmatprep.subr.mxu0 0.0
          %662 = vmatpush2.msra.mxu0 0.0
          %663 = vmatprep.subr.mxu0 0.0
          %664 = vmatpush2.msra.mxu0 0.0
          %665 = vmatprep.subr.mxu0 0.0
          %666 = vmatpush2.msra.mxu0 0.0
          %667 = vmatprep.subr.mxu0 0.0
          %668 = vmatpush2.msra.mxu0 0.0
          %669 = vmatprep.subr.mxu0 0.0
          %670 = vmatpush2.msra.mxu0 0.0
          %671 = vmatprep.subr.mxu0 0.0
          %672 = vmatpush2.msra.mxu0 0.0
          %673 = vmatprep.subr.mxu0 0.0
          %674 = vmatpush2.msra.mxu0 0.0
          %675 = vmatprep.subr.mxu0 0.0
          %676 = vmatpush2.msra.mxu0 0.0
          %677 = vmatprep.subr.mxu0 0.0
          %678 = vmatpush2.msra.mxu0 0.0
          %679 = vmatprep.subr.mxu0 0.0
          %680 = vmatpush2.msra.mxu0 0.0
          %681 = vmatprep.subr.mxu0 0.0
          %682 = vmatpush2.msra.mxu0 0.0
          %683 = vmatprep.subr.mxu0 0.0
          %684 = vmatpush2.msra.mxu0 0.0
          %685 = vmatprep.mubr.f32.mxu0 0.0
          %686 = vmatmul.mubr.f32.gmra.mxu0 %v598
          %v687 = vpop.f32.mrf.mxu0
          %v688 = vadd.f32 %v559, %v687
          %v689 = vpop.f32.mrf.mxu0
          %690 = vmatprep.mubr.f32.mxu0 0.0
          %691 = vmatmul.mubr.f32.gmra.mxu0 %v601
          %v692 = vpop.f32.mrf.mxu0
          %v693 = vadd.f32 %v564, %v692
          %v694 = vpop.f32.mrf.mxu0
          %695 = vmatprep.mubr.f32.mxu0 0.0
          %696 = vmatmul.mubr.f32.gmra.mxu0 %v604
          %v697 = vpop.f32.mrf.mxu0
          %v698 = vadd.f32 %v569, %v697
          %v699 = vpop.f32.mrf.mxu0
          %700 = vmatprep.mubr.f32.mxu0 0.0
          %701 = vmatmul.mubr.f32.gmra.mxu0 %v607
          %v702 = vpop.f32.mrf.mxu0
          %v703 = vadd.f32 %v574, %v702
          %v704 = vpop.f32.mrf.mxu0
          %705 = vmatprep.mubr.f32.mxu0 0.0
          %706 = vmatmul.mubr.f32.gmra.mxu0 %v610
          %v707 = vpop.f32.mrf.mxu0
          %v708 = vadd.f32 %v579, %v707
          %v709 = vpop.f32.mrf.mxu0
          %710 = vmatprep.mubr.f32.mxu0 0.0
          %711 = vmatmul.mubr.f32.gmra.mxu0 %v613
          %v712 = vpop.f32.mrf.mxu0
          %v713 = vadd.f32 %v584, %v712
          %v714 = vpop.f32.mrf.mxu0
          %715 = vmatprep.mubr.f32.mxu0 0.0
          %716 = vmatmul.mubr.f32.gmra.mxu0 %v616
          %v717 = vpop.f32.mrf.mxu0
          %v718 = vadd.f32 %v589, %v717
          %v719 = vpop.f32.mrf.mxu0
          %720 = vmatprep.mubr.f32.mxu0 0.0
          %721 = vmatmul.mubr.f32.gmra.mxu0 %v619
          %v722 = vpop.f32.mrf.mxu0
          %v723 = vadd.f32 %v594, %v722
          %v724 = vpop.f32.mrf.mxu0
          %725 = vdwg.mxu0
          %726 = vst [vmem:[#allocation3] sm:$0xff] %v688
          %727 = vst [vmem:[#allocation3 + $0x8] sm:$0xff] %v693
          %728 = vst [vmem:[#allocation3 + $0x10] sm:$0xff] %v698
          %729 = vst [vmem:[#allocation3 + $0x18] sm:$0xff] %v703
          %730 = vst [vmem:[#allocation3 + $0x20] sm:$0xff] %v708
          %731 = vst [vmem:[#allocation3 + $0x28] sm:$0xff] %v713
          %732 = vst [vmem:[#allocation3 + $0x30] sm:$0xff] %v718
          %733 = vst [vmem:[#allocation3 + $0x38] sm:$0xff] %v723
          %v734 = vld [vmem:[#allocation12] sm:$0xff]
          %v735 = vld [vmem:[#allocation12 + $0x8] sm:$0xff]
          %v736 = vld [vmem:[#allocation12 + $0x10] sm:$0xff]
          %v737 = vld [vmem:[#allocation12 + $0x18] sm:$0xff]
          %v738 = vld [vmem:[#allocation12 + $0x20] sm:$0xff]
          %v739 = vld [vmem:[#allocation12 + $0x28] sm:$0xff]
          %v740 = vld [vmem:[#allocation12 + $0x30] sm:$0xff]
          %v741 = vld [vmem:[#allocation12 + $0x38] sm:$0xff]
          %v742 = vld [vmem:[%s447] sm:$0xff]
          %v743 = vld [vmem:[%s447 + $0x8] sm:$0xff]
          %v744 = vld [vmem:[%s447 + $0x10] sm:$0xff]
          %v745 = vld [vmem:[%s447 + $0x18] sm:$0xff]
          %v746 = vld [vmem:[%s447 + $0x20] sm:$0xff]
          %v747 = vld [vmem:[%s447 + $0x28] sm:$0xff]
          %v748 = vld [vmem:[%s447 + $0x30] sm:$0xff]
          %v749 = vld [vmem:[%s447 + $0x38] sm:$0xff]
          %v750 = vld [vmem:[%s8] sm:$0xff]
          %v751 = vld [vmem:[%s8 + $0x8] sm:$0xff]
          %v752 = vld [vmem:[%s8 + $0x10] sm:$0xff]
          %v753 = vld [vmem:[%s8 + $0x18] sm:$0xff]
          %v754 = vld [vmem:[%s8 + $0x20] sm:$0xff]
          %v755 = vld [vmem:[%s8 + $0x28] sm:$0xff]
          %v756 = vld [vmem:[%s8 + $0x30] sm:$0xff]
          %v757 = vld [vmem:[%s8 + $0x38] sm:$0xff]
          %759 = vset.pattern.permute.xlu0 0
          %760 = vperm.xlu0 %759, %v750
          %v761 = vpop.permute.xlu0 %760
          %764 = vset.pattern.permute.xlu0 0
          %765 = vperm.xlu0 %764, %v751
          %v766 = vpop.permute.xlu0 %765
          %769 = vset.pattern.permute.xlu0 0
          %770 = vperm.xlu0 %769, %v752
          %v771 = vpop.permute.xlu0 %770
          %774 = vset.pattern.permute.xlu0 0
          %775 = vperm.xlu0 %774, %v753
          %v776 = vpop.permute.xlu0 %775
          %779 = vset.pattern.permute.xlu0 0
          %780 = vperm.xlu0 %779, %v754
          %v781 = vpop.permute.xlu0 %780
          %784 = vset.pattern.permute.xlu0 0
          %785 = vperm.xlu0 %784, %v755
          %v786 = vpop.permute.xlu0 %785
          %789 = vset.pattern.permute.xlu0 0
          %790 = vperm.xlu0 %789, %v756
          %v791 = vpop.permute.xlu0 %790
          %794 = vset.pattern.permute.xlu0 0
          %795 = vperm.xlu0 %794, %v757
          %v796 = vpop.permute.xlu0 %795
          %v799 = vsel %vm596, %v734, 0
          %v802 = vsel %vm596, %v735, 0
          %v805 = vsel %vm596, %v736, 0
          %v808 = vsel %vm596, %v737, 0
          %v811 = vsel %vm596, %v738, 0
          %v814 = vsel %vm596, %v739, 0
          %v817 = vsel %vm596, %v740, 0
          %v820 = vsel %vm596, %v741, 0
          %822 = vmatprep.subr.mxu0 0.0
          %823 = vmatpush1.msra.mxu0 0.0
          %824 = vmatprep.subr.mxu0 0.0
          %825 = vmatpush1.msra.mxu0 0.0
          %826 = vmatprep.subr.mxu0 0.0
          %827 = vmatpush1.msra.mxu0 0.0
          %828 = vmatprep.subr.mxu0 0.0
          %829 = vmatpush1.msra.mxu0 0.0
          %830 = vmatprep.subr.mxu0 0.0
          %831 = vmatpush1.msra.mxu0 0.0
          %832 = vmatprep.subr.mxu0 0.0
          %833 = vmatpush1.msra.mxu0 0.0
          %834 = vmatprep.subr.mxu0 0.0
          %835 = vmatpush1.msra.mxu0 0.0
          %836 = vmatprep.subr.mxu0 0.0
          %837 = vmatpush1.msra.mxu0 0.0
          %838 = vmatprep.subr.mxu0 0.0
          %839 = vmatpush1.msra.mxu0 %v749
          %840 = vmatprep.subr.mxu0 0.0
          %841 = vmatpush1.msra.mxu0 %v748
          %842 = vmatprep.subr.mxu0 0.0
          %843 = vmatpush1.msra.mxu0 %v747
          %844 = vmatprep.subr.mxu0 0.0
          %845 = vmatpush1.msra.mxu0 %v746
          %846 = vmatprep.subr.mxu0 0.0
          %847 = vmatpush1.msra.mxu0 %v745
          %848 = vmatprep.subr.mxu0 0.0
          %849 = vmatpush1.msra.mxu0 %v744
          %850 = vmatprep.subr.mxu0 0.0
          %851 = vmatpush1.msra.mxu0 %v743
          %852 = vmatprep.subr.mxu0 0.0
          %853 = vmatpush1.msra.mxu0 %v742
          %854 = vmatprep.subr.mxu0 0.0
          %855 = vmatpush2.msra.mxu0 0.0
          %856 = vmatprep.subr.mxu0 0.0
          %857 = vmatpush2.msra.mxu0 0.0
          %858 = vmatprep.subr.mxu0 0.0
          %859 = vmatpush2.msra.mxu0 0.0
          %860 = vmatprep.subr.mxu0 0.0
          %861 = vmatpush2.msra.mxu0 0.0
          %862 = vmatprep.subr.mxu0 0.0
          %863 = vmatpush2.msra.mxu0 0.0
          %864 = vmatprep.subr.mxu0 0.0
          %865 = vmatpush2.msra.mxu0 0.0
          %866 = vmatprep.subr.mxu0 0.0
          %867 = vmatpush2.msra.mxu0 0.0
          %868 = vmatprep.subr.mxu0 0.0
          %869 = vmatpush2.msra.mxu0 0.0
          %870 = vmatprep.subr.mxu0 0.0
          %871 = vmatpush2.msra.mxu0 0.0
          %872 = vmatprep.subr.mxu0 0.0
          %873 = vmatpush2.msra.mxu0 0.0
          %874 = vmatprep.subr.mxu0 0.0
          %875 = vmatpush2.msra.mxu0 0.0
          %876 = vmatprep.subr.mxu0 0.0
          %877 = vmatpush2.msra.mxu0 0.0
          %878 = vmatprep.subr.mxu0 0.0
          %879 = vmatpush2.msra.mxu0 0.0
          %880 = vmatprep.subr.mxu0 0.0
          %881 = vmatpush2.msra.mxu0 0.0
          %882 = vmatprep.subr.mxu0 0.0
          %883 = vmatpush2.msra.mxu0 0.0
          %884 = vmatprep.subr.mxu0 0.0
          %885 = vmatpush2.msra.mxu0 0.0
          %886 = vmatprep.mubr.f32.mxu0 0.0
          %887 = vmatmul.mubr.f32.gmra.mxu0 %v799
          %v888 = vpop.f32.mrf.mxu0
          %v889 = vadd.f32 %v761, %v888
          %v890 = vpop.f32.mrf.mxu0
          %891 = vmatprep.mubr.f32.mxu0 0.0
          %892 = vmatmul.mubr.f32.gmra.mxu0 %v802
          %v893 = vpop.f32.mrf.mxu0
          %v894 = vadd.f32 %v766, %v893
          %v895 = vpop.f32.mrf.mxu0
          %896 = vmatprep.mubr.f32.mxu0 0.0
          %897 = vmatmul.mubr.f32.gmra.mxu0 %v805
          %v898 = vpop.f32.mrf.mxu0
          %v899 = vadd.f32 %v771, %v898
          %v900 = vpop.f32.mrf.mxu0
          %901 = vmatprep.mubr.f32.mxu0 0.0
          %902 = vmatmul.mubr.f32.gmra.mxu0 %v808
          %v903 = vpop.f32.mrf.mxu0
          %v904 = vadd.f32 %v776, %v903
          %v905 = vpop.f32.mrf.mxu0
          %906 = vmatprep.mubr.f32.mxu0 0.0
          %907 = vmatmul.mubr.f32.gmra.mxu0 %v811
          %v908 = vpop.f32.mrf.mxu0
          %v909 = vadd.f32 %v781, %v908
          %v910 = vpop.f32.mrf.mxu0
          %911 = vmatprep.mubr.f32.mxu0 0.0
          %912 = vmatmul.mubr.f32.gmra.mxu0 %v814
          %v913 = vpop.f32.mrf.mxu0
          %v914 = vadd.f32 %v786, %v913
          %v915 = vpop.f32.mrf.mxu0
          %916 = vmatprep.mubr.f32.mxu0 0.0
          %917 = vmatmul.mubr.f32.gmra.mxu0 %v817
          %v918 = vpop.f32.mrf.mxu0
          %v919 = vadd.f32 %v791, %v918
          %v920 = vpop.f32.mrf.mxu0
          %921 = vmatprep.mubr.f32.mxu0 0.0
          %922 = vmatmul.mubr.f32.gmra.mxu0 %v820
          %v923 = vpop.f32.mrf.mxu0
          %v924 = vadd.f32 %v796, %v923
          %v925 = vpop.f32.mrf.mxu0
          %926 = vdwg.mxu0
          %927 = vst [vmem:[#allocation4] sm:$0xff] %v889
          %928 = vst [vmem:[#allocation4 + $0x8] sm:$0xff] %v894
          %929 = vst [vmem:[#allocation4 + $0x10] sm:$0xff] %v899
          %930 = vst [vmem:[#allocation4 + $0x18] sm:$0xff] %v904
          %931 = vst [vmem:[#allocation4 + $0x20] sm:$0xff] %v909
          %932 = vst [vmem:[#allocation4 + $0x28] sm:$0xff] %v914
          %933 = vst [vmem:[#allocation4 + $0x30] sm:$0xff] %v919
          %934 = vst [vmem:[#allocation4 + $0x38] sm:$0xff] %v924
        $region88: #{tpu_custom_call.1} parent=63 // pred_fallthru
          _
        %v935 = vld [vmem:[#allocation9] sm:$0xff]
        %v936 = vld [vmem:[#allocation9 + $0x8] sm:$0xff]
        %v937 = vld [vmem:[#allocation9 + $0x10] sm:$0xff]
        %v938 = vld [vmem:[#allocation9 + $0x18] sm:$0xff]
        %v939 = vld [vmem:[#allocation9 + $0x20] sm:$0xff]
        %v940 = vld [vmem:[#allocation9 + $0x28] sm:$0xff]
        %v941 = vld [vmem:[#allocation9 + $0x30] sm:$0xff]
        %v942 = vld [vmem:[#allocation9 + $0x38] sm:$0xff]
        %v943 = vld [vmem:[%s522] sm:$0xff]
        %v944 = vld [vmem:[%s522 + $0x8] sm:$0xff]
        %v945 = vld [vmem:[%s522 + $0x10] sm:$0xff]
        %v946 = vld [vmem:[%s522 + $0x18] sm:$0xff]
        %v947 = vld [vmem:[%s522 + $0x20] sm:$0xff]
        %v948 = vld [vmem:[%s522 + $0x28] sm:$0xff]
        %v949 = vld [vmem:[%s522 + $0x30] sm:$0xff]
        %v950 = vld [vmem:[%s522 + $0x38] sm:$0xff]
        %v951 = vld [vmem:[%s4] sm:$0xff]
        %v952 = vld [vmem:[%s4 + $0x8] sm:$0xff]
        %v953 = vld [vmem:[%s4 + $0x10] sm:$0xff]
        %v954 = vld [vmem:[%s4 + $0x18] sm:$0xff]
        %v955 = vld [vmem:[%s4 + $0x20] sm:$0xff]
        %v956 = vld [vmem:[%s4 + $0x28] sm:$0xff]
        %v957 = vld [vmem:[%s4 + $0x30] sm:$0xff]
        %v958 = vld [vmem:[%s4 + $0x38] sm:$0xff]
        %960 = vset.pattern.permute.xlu0 0
        %961 = vperm.xlu0 %960, %v951
        %v962 = vpop.permute.xlu0 %961
        %965 = vset.pattern.permute.xlu0 0
        %966 = vperm.xlu0 %965, %v952
        %v967 = vpop.permute.xlu0 %966
        %970 = vset.pattern.permute.xlu0 0
        %971 = vperm.xlu0 %970, %v953
        %v972 = vpop.permute.xlu0 %971
        %975 = vset.pattern.permute.xlu0 0
        %976 = vperm.xlu0 %975, %v954
        %v977 = vpop.permute.xlu0 %976
        %980 = vset.pattern.permute.xlu0 0
        %981 = vperm.xlu0 %980, %v955
        %v982 = vpop.permute.xlu0 %981
        %985 = vset.pattern.permute.xlu0 0
        %986 = vperm.xlu0 %985, %v956
        %v987 = vpop.permute.xlu0 %986
        %990 = vset.pattern.permute.xlu0 0
        %991 = vperm.xlu0 %990, %v957
        %v992 = vpop.permute.xlu0 %991
        %995 = vset.pattern.permute.xlu0 0
        %996 = vperm.xlu0 %995, %v958
        %v997 = vpop.permute.xlu0 %996
        %vm999 = vcmask 523264
        %v1001 = vsel %vm999, %v935, 0
        %v1004 = vsel %vm999, %v936, 0
        %v1007 = vsel %vm999, %v937, 0
        %v1010 = vsel %vm999, %v938, 0
        %v1013 = vsel %vm999, %v939, 0
        %v1016 = vsel %vm999, %v940, 0
        %v1019 = vsel %vm999, %v941, 0
        %v1022 = vsel %vm999, %v942, 0
        %1024 = vmatprep.subr.mxu0 0.0
        %1025 = vmatpush1.msra.mxu0 0.0
        %1026 = vmatprep.subr.mxu0 0.0
        %1027 = vmatpush1.msra.mxu0 0.0
        %1028 = vmatprep.subr.mxu0 0.0
        %1029 = vmatpush1.msra.mxu0 0.0
        %1030 = vmatprep.subr.mxu0 0.0
        %1031 = vmatpush1.msra.mxu0 0.0
        %1032 = vmatprep.subr.mxu0 0.0
        %1033 = vmatpush1.msra.mxu0 0.0
        %1034 = vmatprep.subr.mxu0 0.0
        %1035 = vmatpush1.msra.mxu0 0.0
        %1036 = vmatprep.subr.mxu0 0.0
        %1037 = vmatpush1.msra.mxu0 0.0
        %1038 = vmatprep.subr.mxu0 0.0
        %1039 = vmatpush1.msra.mxu0 0.0
        %1040 = vmatprep.subr.mxu0 0.0
        %1041 = vmatpush1.msra.mxu0 %v950
        %1042 = vmatprep.subr.mxu0 0.0
        %1043 = vmatpush1.msra.mxu0 %v949
        %1044 = vmatprep.subr.mxu0 0.0
        %1045 = vmatpush1.msra.mxu0 %v948
        %1046 = vmatprep.subr.mxu0 0.0
        %1047 = vmatpush1.msra.mxu0 %v947
        %1048 = vmatprep.subr.mxu0 0.0
        %1049 = vmatpush1.msra.mxu0 %v946
        %1050 = vmatprep.subr.mxu0 0.0
        %1051 = vmatpush1.msra.mxu0 %v945
        %1052 = vmatprep.subr.mxu0 0.0
        %1053 = vmatpush1.msra.mxu0 %v944
        %1054 = vmatprep.subr.mxu0 0.0
        %1055 = vmatpush1.msra.mxu0 %v943
        %1056 = vmatprep.subr.mxu0 0.0
        %1057 = vmatpush2.msra.mxu0 0.0
        %1058 = vmatprep.subr.mxu0 0.0
        %1059 = vmatpush2.msra.mxu0 0.0
        %1060 = vmatprep.subr.mxu0 0.0
        %1061 = vmatpush2.msra.mxu0 0.0
        %1062 = vmatprep.subr.mxu0 0.0
        %1063 = vmatpush2.msra.mxu0 0.0
        %1064 = vmatprep.subr.mxu0 0.0
        %1065 = vmatpush2.msra.mxu0 0.0
        %1066 = vmatprep.subr.mxu0 0.0
        %1067 = vmatpush2.msra.mxu0 0.0
        %1068 = vmatprep.subr.mxu0 0.0
        %1069 = vmatpush2.msra.mxu0 0.0
        %1070 = vmatprep.subr.mxu0 0.0
        %1071 = vmatpush2.msra.mxu0 0.0
        %1072 = vmatprep.subr.mxu0 0.0
        %1073 = vmatpush2.msra.mxu0 0.0
        %1074 = vmatprep.subr.mxu0 0.0
        %1075 = vmatpush2.msra.mxu0 0.0
        %1076 = vmatprep.subr.mxu0 0.0
        %1077 = vmatpush2.msra.mxu0 0.0
        %1078 = vmatprep.subr.mxu0 0.0
        %1079 = vmatpush2.msra.mxu0 0.0
        %1080 = vmatprep.subr.mxu0 0.0
        %1081 = vmatpush2.msra.mxu0 0.0
        %1082 = vmatprep.subr.mxu0 0.0
        %1083 = vmatpush2.msra.mxu0 0.0
        %1084 = vmatprep.subr.mxu0 0.0
        %1085 = vmatpush2.msra.mxu0 0.0
        %1086 = vmatprep.subr.mxu0 0.0
        %1087 = vmatpush2.msra.mxu0 0.0
        %1088 = vmatprep.mubr.f32.mxu0 0.0
        %1089 = vmatmul.mubr.f32.gmra.mxu0 %v1001
        %v1090 = vpop.f32.mrf.mxu0
        %v1091 = vadd.f32 %v962, %v1090
        %v1092 = vpop.f32.mrf.mxu0
        %1093 = vmatprep.mubr.f32.mxu0 0.0
        %1094 = vmatmul.mubr.f32.gmra.mxu0 %v1004
        %v1095 = vpop.f32.mrf.mxu0
        %v1096 = vadd.f32 %v967, %v1095
        %v1097 = vpop.f32.mrf.mxu0
        %1098 = vmatprep.mubr.f32.mxu0 0.0
        %1099 = vmatmul.mubr.f32.gmra.mxu0 %v1007
        %v1100 = vpop.f32.mrf.mxu0
        %v1101 = vadd.f32 %v972, %v1100
        %v1102 = vpop.f32.mrf.mxu0
        %1103 = vmatprep.mubr.f32.mxu0 0.0
        %1104 = vmatmul.mubr.f32.gmra.mxu0 %v1010
        %v1105 = vpop.f32.mrf.mxu0
        %v1106 = vadd.f32 %v977, %v1105
        %v1107 = vpop.f32.mrf.mxu0
        %1108 = vmatprep.mubr.f32.mxu0 0.0
        %1109 = vmatmul.mubr.f32.gmra.mxu0 %v1013
        %v1110 = vpop.f32.mrf.mxu0
        %v1111 = vadd.f32 %v982, %v1110
        %v1112 = vpop.f32.mrf.mxu0
        %1113 = vmatprep.mubr.f32.mxu0 0.0
        %1114 = vmatmul.mubr.f32.gmra.mxu0 %v1016
        %v1115 = vpop.f32.mrf.mxu0
        %v1116 = vadd.f32 %v987, %v1115
        %v1117 = vpop.f32.mrf.mxu0
        %1118 = vmatprep.mubr.f32.mxu0 0.0
        %1119 = vmatmul.mubr.f32.gmra.mxu0 %v1019
        %v1120 = vpop.f32.mrf.mxu0
        %v1121 = vadd.f32 %v992, %v1120
        %v1122 = vpop.f32.mrf.mxu0
        %1123 = vmatprep.mubr.f32.mxu0 0.0
        %1124 = vmatmul.mubr.f32.gmra.mxu0 %v1022
        %v1125 = vpop.f32.mrf.mxu0
        %v1126 = vadd.f32 %v997, %v1125
        %v1127 = vpop.f32.mrf.mxu0
        %1128 = vdwg.mxu0
        %1129 = vst [vmem:[#allocation2] sm:$0xff] %v1091
        %1130 = vst [vmem:[#allocation2 + $0x8] sm:$0xff] %v1096
        %1131 = vst [vmem:[#allocation2 + $0x10] sm:$0xff] %v1101
        %1132 = vst [vmem:[#allocation2 + $0x18] sm:$0xff] %v1106
        %1133 = vst [vmem:[#allocation2 + $0x20] sm:$0xff] %v1111
        %1134 = vst [vmem:[#allocation2 + $0x28] sm:$0xff] %v1116
        %1135 = vst [vmem:[#allocation2 + $0x30] sm:$0xff] %v1121
        %1136 = vst [vmem:[#allocation2 + $0x38] sm:$0xff] %v1126
        %1137 = vst [vmem:[#allocation5] sm:$0xff] 0.0
        %1138 = vst [vmem:[#allocation5 + $0x8] sm:$0xff] 0.0
        %1139 = vst [vmem:[#allocation5 + $0x10] sm:$0xff] 0.0
        %1140 = vst [vmem:[#allocation5 + $0x18] sm:$0xff] 0.0
        %1141 = vst [vmem:[#allocation5 + $0x20] sm:$0xff] 0.0
        %1142 = vst [vmem:[#allocation5 + $0x28] sm:$0xff] 0.0
        %1143 = vst [vmem:[#allocation5 + $0x30] sm:$0xff] 0.0
        %1144 = vst [vmem:[#allocation5 + $0x38] sm:$0xff] 0.0
        %v1145 = vlaneseq
        %v1146 = vand.u32 %v1145, 127
        %vm1147 = vcmp.lt.s32.totalorder %v1146, 24
        %v1148 = vsel %vm1147, 0.0, -1e+30
        loop: start=0, step=1, limit=4
        $region89: #{tpu_custom_call.1} parent=63 // loop_pre_header
          _
        $region90: #{tpu_custom_call.1} parent=63 // loop_header
          %s1150 = sphi 0, %s1154
          %p1151 = scmp.ge.s32.totalorder %s1150, 4
        $region91: #{tpu_custom_call.1} parent=63 // loop_header_branch
          %1153 = sbr.rel (%p1151) target = $region95
        $region92: #{tpu_custom_call.1} parent=63 // loop_body
          %s1155 = smul.u32 %s1150, 16
          %s1156 = scalar_lea.vmem [#allocation2], %s1155
          %v1157 = vld [vmem:[%s1156] sm:$0xff]
          %v1158 = vld [vmem:[%s1156 + $0x8] sm:$0xff]
          %s1159 = scalar_lea.vmem [#allocation3], %s1155
          %v1160 = vld [vmem:[%s1159] sm:$0xff]
          %v1161 = vld [vmem:[%s1159 + $0x8] sm:$0xff]
          %s1162 = scalar_lea.vmem [#allocation4], %s1155
          %v1163 = vld [vmem:[%s1162] sm:$0xff]
          %v1164 = vld [vmem:[%s1162 + $0x8] sm:$0xff]
          %1165 = vxpose.xlu0.b32.start [1/16] %v1157, 128
          %1166 = vxpose.xlu0.b32.cont [2/16] %v1158, 128
          %1167 = vxpose.xlu0.b32.cont [3/16] 0.0, 128
          %1168 = vxpose.xlu0.b32.cont [4/16] 0.0, 128
          %1169 = vxpose.xlu0.b32.cont [5/16] 0.0, 128
          %1170 = vxpose.xlu0.b32.cont [6/16] 0.0, 128
          %1171 = vxpose.xlu0.b32.cont [7/16] 0.0, 128
          %1172 = vxpose.xlu0.b32.cont [8/16] 0.0, 128
          %1173 = vxpose.xlu0.b32.cont [9/16] 0.0, 128
          %1174 = vxpose.xlu0.b32.cont [10/16] 0.0, 128
          %1175 = vxpose.xlu0.b32.cont [11/16] 0.0, 128
          %1176 = vxpose.xlu0.b32.cont [12/16] 0.0, 128
          %1177 = vxpose.xlu0.b32.cont [13/16] 0.0, 128
          %1178 = vxpose.xlu0.b32.cont [14/16] 0.0, 128
          %1179 = vxpose.xlu0.b32.cont [15/16] 0.0, 128
          %1180 = vxpose.xlu0.b32.end [16/16] 0.0, 128
          %v1181 = vpop.trf.xlu0
          %v1182 = vpop.trf.xlu0
          %v1183 = vpop.trf.xlu0
          %v1184 = vpop.trf.xlu0
          %v1185 = vpop.trf.xlu0
          %v1186 = vpop.trf.xlu0
          %v1187 = vpop.trf.xlu0
          %v1188 = vpop.trf.xlu0
          %v1189 = vpop.trf.xlu0
          %v1190 = vpop.trf.xlu0
          %v1191 = vpop.trf.xlu0
          %v1192 = vpop.trf.xlu0
          %v1193 = vpop.trf.xlu0
          %v1194 = vpop.trf.xlu0
          %v1195 = vpop.trf.xlu0
          %v1196 = vpop.trf.xlu0
          %vm1197 = vcmask 130048
          %v1199 = vsel %vm1197, %v1181, 0
          %v1202 = vsel %vm1197, %v1182, 0
          %v1205 = vsel %vm1197, %v1183, 0
          %v1208 = vsel %vm1197, %v1184, 0
          %v1211 = vsel %vm1197, %v1185, 0
          %v1214 = vsel %vm1197, %v1186, 0
          %v1217 = vsel %vm1197, %v1187, 0
          %v1220 = vsel %vm1197, %v1188, 0
          %v1223 = vsel %vm1197, %v1189, 0
          %v1226 = vsel %vm1197, %v1190, 0
          %v1229 = vsel %vm1197, %v1191, 0
          %v1232 = vsel %vm1197, %v1192, 0
          %v1235 = vsel %vm1197, %v1193, 0
          %v1238 = vsel %vm1197, %v1194, 0
          %v1241 = vsel %vm1197, %v1195, 0
          %v1244 = vsel %vm1197, %v1196, 0
          %1246 = vmatprep.subr.mxu0 0.0
          %1247 = vmatpush1.msra.mxu0 0.0
          %1248 = vmatprep.subr.mxu0 0.0
          %1249 = vmatpush1.msra.mxu0 0.0
          %1250 = vmatprep.subr.mxu0 0.0
          %1251 = vmatpush1.msra.mxu0 0.0
          %1252 = vmatprep.subr.mxu0 0.0
          %1253 = vmatpush1.msra.mxu0 0.0
          %1254 = vmatprep.subr.mxu0 0.0
          %1255 = vmatpush1.msra.mxu0 0.0
          %1256 = vmatprep.subr.mxu0 0.0
          %1257 = vmatpush1.msra.mxu0 0.0
          %1258 = vmatprep.subr.mxu0 0.0
          %1259 = vmatpush1.msra.mxu0 0.0
          %1260 = vmatprep.subr.mxu0 0.0
          %1261 = vmatpush1.msra.mxu0 0.0
          %1262 = vmatprep.subr.mxu0 0.0
          %1263 = vmatpush1.msra.mxu0 0.0
          %1264 = vmatprep.subr.mxu0 0.0
          %1265 = vmatpush1.msra.mxu0 0.0
          %1266 = vmatprep.subr.mxu0 0.0
          %1267 = vmatpush1.msra.mxu0 0.0
          %1268 = vmatprep.subr.mxu0 0.0
          %1269 = vmatpush1.msra.mxu0 0.0
          %1270 = vmatprep.subr.mxu0 0.0
          %1271 = vmatpush1.msra.mxu0 0.0
          %1272 = vmatprep.subr.mxu0 0.0
          %1273 = vmatpush1.msra.mxu0 0.0
          %1274 = vmatprep.subr.mxu0 0.0
          %1275 = vmatpush1.msra.mxu0 %v1161
          %1276 = vmatprep.subr.mxu0 0.0
          %1277 = vmatpush1.msra.mxu0 %v1160
          %1278 = vmatprep.subr.mxu0 0.0
          %1279 = vmatpush2.msra.mxu0 0.0
          %1280 = vmatprep.subr.mxu0 0.0
          %1281 = vmatpush2.msra.mxu0 0.0
          %1282 = vmatprep.subr.mxu0 0.0
          %1283 = vmatpush2.msra.mxu0 0.0
          %1284 = vmatprep.subr.mxu0 0.0
          %1285 = vmatpush2.msra.mxu0 0.0
          %1286 = vmatprep.subr.mxu0 0.0
          %1287 = vmatpush2.msra.mxu0 0.0
          %1288 = vmatprep.subr.mxu0 0.0
          %1289 = vmatpush2.msra.mxu0 0.0
          %1290 = vmatprep.subr.mxu0 0.0
          %1291 = vmatpush2.msra.mxu0 0.0
          %1292 = vmatprep.subr.mxu0 0.0
          %1293 = vmatpush2.msra.mxu0 0.0
          %1294 = vmatprep.subr.mxu0 0.0
          %1295 = vmatpush2.msra.mxu0 0.0
          %1296 = vmatprep.subr.mxu0 0.0
          %1297 = vmatpush2.msra.mxu0 0.0
          %1298 = vmatprep.subr.mxu0 0.0
          %1299 = vmatpush2.msra.mxu0 0.0
          %1300 = vmatprep.subr.mxu0 0.0
          %1301 = vmatpush2.msra.mxu0 0.0
          %1302 = vmatprep.subr.mxu0 0.0
          %1303 = vmatpush2.msra.mxu0 0.0
          %1304 = vmatprep.subr.mxu0 0.0
          %1305 = vmatpush2.msra.mxu0 0.0
          %1306 = vmatprep.subr.mxu0 0.0
          %1307 = vmatpush2.msra.mxu0 0.0
          %1308 = vmatprep.subr.mxu0 0.0
          %1309 = vmatpush2.msra.mxu0 0.0
          %1310 = vmatprep.mubr.f32.mxu0 0.0
          %1311 = vmatmul.mubr.f32.gmra.mxu0 %v1199
          %v1312 = vpop.f32.mrf.mxu0
          %v1313 = vadd.f32 %v1148, %v1312
          %v1314 = vpop.f32.mrf.mxu0
          %1315 = vmatprep.mubr.f32.mxu0 0.0
          %1316 = vmatmul.mubr.f32.gmra.mxu0 %v1202
          %v1317 = vpop.f32.mrf.mxu0
          %v1318 = vadd.f32 %v1148, %v1317
          %v1319 = vpop.f32.mrf.mxu0
          %1320 = vmatprep.mubr.f32.mxu0 0.0
          %1321 = vmatmul.mubr.f32.gmra.mxu0 %v1205
          %v1322 = vpop.f32.mrf.mxu0
          %v1323 = vadd.f32 %v1148, %v1322
          %v1324 = vpop.f32.mrf.mxu0
          %1325 = vmatprep.mubr.f32.mxu0 0.0
          %1326 = vmatmul.mubr.f32.gmra.mxu0 %v1208
          %v1327 = vpop.f32.mrf.mxu0
          %v1328 = vadd.f32 %v1148, %v1327
          %v1329 = vpop.f32.mrf.mxu0
          %1330 = vmatprep.mubr.f32.mxu0 0.0
          %1331 = vmatmul.mubr.f32.gmra.mxu0 %v1211
          %v1332 = vpop.f32.mrf.mxu0
          %v1333 = vadd.f32 %v1148, %v1332
          %v1334 = vpop.f32.mrf.mxu0
          %1335 = vmatprep.mubr.f32.mxu0 0.0
          %1336 = vmatmul.mubr.f32.gmra.mxu0 %v1214
          %v1337 = vpop.f32.mrf.mxu0
          %v1338 = vadd.f32 %v1148, %v1337
          %v1339 = vpop.f32.mrf.mxu0
          %1340 = vmatprep.mubr.f32.mxu0 0.0
          %1341 = vmatmul.mubr.f32.gmra.mxu0 %v1217
          %v1342 = vpop.f32.mrf.mxu0
          %v1343 = vadd.f32 %v1148, %v1342
          %v1344 = vpop.f32.mrf.mxu0
          %1345 = vmatprep.mubr.f32.mxu0 0.0
          %1346 = vmatmul.mubr.f32.gmra.mxu0 %v1220
          %v1347 = vpop.f32.mrf.mxu0
          %v1348 = vadd.f32 %v1148, %v1347
          %v1349 = vpop.f32.mrf.mxu0
          %1350 = vmatprep.mubr.f32.mxu0 0.0
          %1351 = vmatmul.mubr.f32.gmra.mxu0 %v1223
          %v1352 = vpop.f32.mrf.mxu0
          %v1353 = vadd.f32 %v1148, %v1352
          %v1354 = vpop.f32.mrf.mxu0
          %1355 = vmatprep.mubr.f32.mxu0 0.0
          %1356 = vmatmul.mubr.f32.gmra.mxu0 %v1226
          %v1357 = vpop.f32.mrf.mxu0
          %v1358 = vadd.f32 %v1148, %v1357
          %v1359 = vpop.f32.mrf.mxu0
          %1360 = vmatprep.mubr.f32.mxu0 0.0
          %1361 = vmatmul.mubr.f32.gmra.mxu0 %v1229
          %v1362 = vpop.f32.mrf.mxu0
          %v1363 = vadd.f32 %v1148, %v1362
          %v1364 = vpop.f32.mrf.mxu0
          %1365 = vmatprep.mubr.f32.mxu0 0.0
          %1366 = vmatmul.mubr.f32.gmra.mxu0 %v1232
          %v1367 = vpop.f32.mrf.mxu0
          %v1368 = vadd.f32 %v1148, %v1367
          %v1369 = vpop.f32.mrf.mxu0
          %1370 = vmatprep.mubr.f32.mxu0 0.0
          %1371 = vmatmul.mubr.f32.gmra.mxu0 %v1235
          %v1372 = vpop.f32.mrf.mxu0
          %v1373 = vadd.f32 %v1148, %v1372
          %v1374 = vpop.f32.mrf.mxu0
          %1375 = vmatprep.mubr.f32.mxu0 0.0
          %1376 = vmatmul.mubr.f32.gmra.mxu0 %v1238
          %v1377 = vpop.f32.mrf.mxu0
          %v1378 = vadd.f32 %v1148, %v1377
          %v1379 = vpop.f32.mrf.mxu0
          %1380 = vmatprep.mubr.f32.mxu0 0.0
          %1381 = vmatmul.mubr.f32.gmra.mxu0 %v1241
          %v1382 = vpop.f32.mrf.mxu0
          %v1383 = vadd.f32 %v1148, %v1382
          %v1384 = vpop.f32.mrf.mxu0
          %1385 = vmatprep.mubr.f32.mxu0 0.0
          %1386 = vmatmul.mubr.f32.gmra.mxu0 %v1244
          %v1387 = vpop.f32.mrf.mxu0
          %v1388 = vadd.f32 %v1148, %v1387
          %v1389 = vpop.f32.mrf.mxu0
          %1390 = vdwg.mxu0
          %1391 = vmax.xlane.f32.xlu0 %v1313
          %v1392 = vpop.xlane.xlu0 %1391
          %1393 = vmax.xlane.f32.xlu0 %v1318
          %v1394 = vpop.xlane.xlu0 %1393
          %1395 = vmax.xlane.f32.xlu0 %v1323
          %v1396 = vpop.xlane.xlu0 %1395
          %1397 = vmax.xlane.f32.xlu0 %v1328
          %v1398 = vpop.xlane.xlu0 %1397
          %1399 = vmax.xlane.f32.xlu0 %v1333
          %v1400 = vpop.xlane.xlu0 %1399
          %1401 = vmax.xlane.f32.xlu0 %v1338
          %v1402 = vpop.xlane.xlu0 %1401
          %1403 = vmax.xlane.f32.xlu0 %v1343
          %v1404 = vpop.xlane.xlu0 %1403
          %1405 = vmax.xlane.f32.xlu0 %v1348
          %v1406 = vpop.xlane.xlu0 %1405
          %1407 = vmax.xlane.f32.xlu0 %v1353
          %v1408 = vpop.xlane.xlu0 %1407
          %1409 = vmax.xlane.f32.xlu0 %v1358
          %v1410 = vpop.xlane.xlu0 %1409
          %1411 = vmax.xlane.f32.xlu0 %v1363
          %v1412 = vpop.xlane.xlu0 %1411
          %1413 = vmax.xlane.f32.xlu0 %v1368
          %v1414 = vpop.xlane.xlu0 %1413
          %1415 = vmax.xlane.f32.xlu0 %v1373
          %v1416 = vpop.xlane.xlu0 %1415
          %1417 = vmax.xlane.f32.xlu0 %v1378
          %v1418 = vpop.xlane.xlu0 %1417
          %1419 = vmax.xlane.f32.xlu0 %v1383
          %v1420 = vpop.xlane.xlu0 %1419
          %1421 = vmax.xlane.f32.xlu0 %v1388
          %v1422 = vpop.xlane.xlu0 %1421
          %v1423 = vsub.f32 %v1313, %v1392
          %v1424 = vsub.f32 %v1318, %v1394
          %v1425 = vsub.f32 %v1323, %v1396
          %v1426 = vsub.f32 %v1328, %v1398
          %v1427 = vsub.f32 %v1333, %v1400
          %v1428 = vsub.f32 %v1338, %v1402
          %v1429 = vsub.f32 %v1343, %v1404
          %v1430 = vsub.f32 %v1348, %v1406
          %v1431 = vsub.f32 %v1353, %v1408
          %v1432 = vsub.f32 %v1358, %v1410
          %v1433 = vsub.f32 %v1363, %v1412
          %v1434 = vsub.f32 %v1368, %v1414
          %v1435 = vsub.f32 %v1373, %v1416
          %v1436 = vsub.f32 %v1378, %v1418
          %v1437 = vsub.f32 %v1383, %v1420
          %v1438 = vsub.f32 %v1388, %v1422
          %v1439 = vmul.f32 %v1423, 1.442695
          %v1440 = vpow.pop %v1439
          %v1441 = vmul.f32 %v1424, 1.442695
          %v1442 = vpow.pop %v1441
          %v1443 = vmul.f32 %v1425, 1.442695
          %v1444 = vpow.pop %v1443
          %v1445 = vmul.f32 %v1426, 1.442695
          %v1446 = vpow.pop %v1445
          %v1447 = vmul.f32 %v1427, 1.442695
          %v1448 = vpow.pop %v1447
          %v1449 = vmul.f32 %v1428, 1.442695
          %v1450 = vpow.pop %v1449
          %v1451 = vmul.f32 %v1429, 1.442695
          %v1452 = vpow.pop %v1451
          %v1453 = vmul.f32 %v1430, 1.442695
          %v1454 = vpow.pop %v1453
          %v1455 = vmul.f32 %v1431, 1.442695
          %v1456 = vpow.pop %v1455
          %v1457 = vmul.f32 %v1432, 1.442695
          %v1458 = vpow.pop %v1457
          %v1459 = vmul.f32 %v1433, 1.442695
          %v1460 = vpow.pop %v1459
          %v1461 = vmul.f32 %v1434, 1.442695
          %v1462 = vpow.pop %v1461
          %v1463 = vmul.f32 %v1435, 1.442695
          %v1464 = vpow.pop %v1463
          %v1465 = vmul.f32 %v1436, 1.442695
          %v1466 = vpow.pop %v1465
          %v1467 = vmul.f32 %v1437, 1.442695
          %v1468 = vpow.pop %v1467
          %v1469 = vmul.f32 %v1438, 1.442695
          %v1470 = vpow.pop %v1469
          %1471 = vadd.xlane.f32.xlu0 %v1440
          %v1472 = vpop.xlane.xlu0 %1471
          %1473 = vadd.xlane.f32.xlu0 %v1442
          %v1474 = vpop.xlane.xlu0 %1473
          %1475 = vadd.xlane.f32.xlu0 %v1444
          %v1476 = vpop.xlane.xlu0 %1475
          %1477 = vadd.xlane.f32.xlu0 %v1446
          %v1478 = vpop.xlane.xlu0 %1477
          %1479 = vadd.xlane.f32.xlu0 %v1448
          %v1480 = vpop.xlane.xlu0 %1479
          %1481 = vadd.xlane.f32.xlu0 %v1450
          %v1482 = vpop.xlane.xlu0 %1481
          %1483 = vadd.xlane.f32.xlu0 %v1452
          %v1484 = vpop.xlane.xlu0 %1483
          %1485 = vadd.xlane.f32.xlu0 %v1454
          %v1486 = vpop.xlane.xlu0 %1485
          %1487 = vadd.xlane.f32.xlu0 %v1456
          %v1488 = vpop.xlane.xlu0 %1487
          %1489 = vadd.xlane.f32.xlu0 %v1458
          %v1490 = vpop.xlane.xlu0 %1489
          %1491 = vadd.xlane.f32.xlu0 %v1460
          %v1492 = vpop.xlane.xlu0 %1491
          %1493 = vadd.xlane.f32.xlu0 %v1462
          %v1494 = vpop.xlane.xlu0 %1493
          %1495 = vadd.xlane.f32.xlu0 %v1464
          %v1496 = vpop.xlane.xlu0 %1495
          %1497 = vadd.xlane.f32.xlu0 %v1466
          %v1498 = vpop.xlane.xlu0 %1497
          %1499 = vadd.xlane.f32.xlu0 %v1468
          %v1500 = vpop.xlane.xlu0 %1499
          %1501 = vadd.xlane.f32.xlu0 %v1470
          %v1502 = vpop.xlane.xlu0 %1501
          %1503 = vmatprep.subr.mxu0 0.0
          %1504 = vmatpush1.xpose.msra.mxu0 0.0
          %1505 = vmatprep.subr.mxu0 0.0
          %1506 = vmatpush1.xpose.msra.mxu0 0.0
          %1507 = vmatprep.subr.mxu0 0.0
          %1508 = vmatpush1.xpose.msra.mxu0 0.0
          %1509 = vmatprep.subr.mxu0 0.0
          %1510 = vmatpush1.xpose.msra.mxu0 0.0
          %1511 = vmatprep.subr.mxu0 0.0
          %1512 = vmatpush1.xpose.msra.mxu0 0.0
          %1513 = vmatprep.subr.mxu0 0.0
          %1514 = vmatpush1.xpose.msra.mxu0 0.0
          %1515 = vmatprep.subr.mxu0 0.0
          %1516 = vmatpush1.xpose.msra.mxu0 0.0
          %1517 = vmatprep.subr.mxu0 0.0
          %1518 = vmatpush1.xpose.msra.mxu0 0.0
          %1519 = vmatprep.subr.mxu0 0.0
          %1520 = vmatpush1.xpose.msra.mxu0 0.0
          %1521 = vmatprep.subr.mxu0 0.0
          %1522 = vmatpush1.xpose.msra.mxu0 0.0
          %1523 = vmatprep.subr.mxu0 0.0
          %1524 = vmatpush1.xpose.msra.mxu0 0.0
          %1525 = vmatprep.subr.mxu0 0.0
          %1526 = vmatpush1.xpose.msra.mxu0 0.0
          %1527 = vmatprep.subr.mxu0 0.0
          %1528 = vmatpush1.xpose.msra.mxu0 0.0
          %1529 = vmatprep.subr.mxu0 0.0
          %1530 = vmatpush1.xpose.msra.mxu0 0.0
          %1531 = vmatprep.subr.mxu0 0.0
          %1532 = vmatpush1.xpose.msra.mxu0 %v1164
          %1533 = vmatprep.subr.mxu0 0.0
          %1534 = vmatpush1.xpose.msra.mxu0 %v1163
          %1535 = vmatprep.subr.mxu0 0.0
          %1536 = vmatpush2.xpose.msra.mxu0 0.0
          %1537 = vmatprep.subr.mxu0 0.0
          %1538 = vmatpush2.xpose.msra.mxu0 0.0
          %1539 = vmatprep.subr.mxu0 0.0
          %1540 = vmatpush2.xpose.msra.mxu0 0.0
          %1541 = vmatprep.subr.mxu0 0.0
          %1542 = vmatpush2.xpose.msra.mxu0 0.0
          %1543 = vmatprep.subr.mxu0 0.0
          %1544 = vmatpush2.xpose.msra.mxu0 0.0
          %1545 = vmatprep.subr.mxu0 0.0
          %1546 = vmatpush2.xpose.msra.mxu0 0.0
          %1547 = vmatprep.subr.mxu0 0.0
          %1548 = vmatpush2.xpose.msra.mxu0 0.0
          %1549 = vmatprep.subr.mxu0 0.0
          %1550 = vmatpush2.xpose.msra.mxu0 0.0
          %1551 = vmatprep.subr.mxu0 0.0
          %1552 = vmatpush2.xpose.msra.mxu0 0.0
          %1553 = vmatprep.subr.mxu0 0.0
          %1554 = vmatpush2.xpose.msra.mxu0 0.0
          %1555 = vmatprep.subr.mxu0 0.0
          %1556 = vmatpush2.xpose.msra.mxu0 0.0
          %1557 = vmatprep.subr.mxu0 0.0
          %1558 = vmatpush2.xpose.msra.mxu0 0.0
          %1559 = vmatprep.subr.mxu0 0.0
          %1560 = vmatpush2.xpose.msra.mxu0 0.0
          %1561 = vmatprep.subr.mxu0 0.0
          %1562 = vmatpush2.xpose.msra.mxu0 0.0
          %1563 = vmatprep.subr.mxu0 0.0
          %1564 = vmatpush2.xpose.msra.mxu0 0.0
          %1565 = vmatprep.subr.mxu0 0.0
          %1566 = vmatpush2.xpose.msra.mxu0 0.0
          %1567 = vmatprep.mubr.f32.mxu0 0.0
          %1568 = vmatmul.mubr.f32.gmra.mxu0 %v1440
          %v1569 = vpop.f32.mrf.mxu0
          %v1570 = vadd.f32 0.0, %v1569
          %v1571 = vpop.f32.mrf.mxu0
          %1572 = vmatprep.mubr.f32.mxu0 0.0
          %1573 = vmatmul.mubr.f32.gmra.mxu0 %v1442
          %v1574 = vpop.f32.mrf.mxu0
          %v1575 = vadd.f32 0.0, %v1574
          %v1576 = vpop.f32.mrf.mxu0
          %1577 = vmatprep.mubr.f32.mxu0 0.0
          %1578 = vmatmul.mubr.f32.gmra.mxu0 %v1444
          %v1579 = vpop.f32.mrf.mxu0
          %v1580 = vadd.f32 0.0, %v1579
          %v1581 = vpop.f32.mrf.mxu0
          %1582 = vmatprep.mubr.f32.mxu0 0.0
          %1583 = vmatmul.mubr.f32.gmra.mxu0 %v1446
          %v1584 = vpop.f32.mrf.mxu0
          %v1585 = vadd.f32 0.0, %v1584
          %v1586 = vpop.f32.mrf.mxu0
          %1587 = vmatprep.mubr.f32.mxu0 0.0
          %1588 = vmatmul.mubr.f32.gmra.mxu0 %v1448
          %v1589 = vpop.f32.mrf.mxu0
          %v1590 = vadd.f32 0.0, %v1589
          %v1591 = vpop.f32.mrf.mxu0
          %1592 = vmatprep.mubr.f32.mxu0 0.0
          %1593 = vmatmul.mubr.f32.gmra.mxu0 %v1450
          %v1594 = vpop.f32.mrf.mxu0
          %v1595 = vadd.f32 0.0, %v1594
          %v1596 = vpop.f32.mrf.mxu0
          %1597 = vmatprep.mubr.f32.mxu0 0.0
          %1598 = vmatmul.mubr.f32.gmra.mxu0 %v1452
          %v1599 = vpop.f32.mrf.mxu0
          %v1600 = vadd.f32 0.0, %v1599
          %v1601 = vpop.f32.mrf.mxu0
          %1602 = vmatprep.mubr.f32.mxu0 0.0
          %1603 = vmatmul.mubr.f32.gmra.mxu0 %v1454
          %v1604 = vpop.f32.mrf.mxu0
          %v1605 = vadd.f32 0.0, %v1604
          %v1606 = vpop.f32.mrf.mxu0
          %1607 = vmatprep.mubr.f32.mxu0 0.0
          %1608 = vmatmul.mubr.f32.gmra.mxu0 %v1456
          %v1609 = vpop.f32.mrf.mxu0
          %v1610 = vadd.f32 0.0, %v1609
          %v1611 = vpop.f32.mrf.mxu0
          %1612 = vmatprep.mubr.f32.mxu0 0.0
          %1613 = vmatmul.mubr.f32.gmra.mxu0 %v1458
          %v1614 = vpop.f32.mrf.mxu0
          %v1615 = vadd.f32 0.0, %v1614
          %v1616 = vpop.f32.mrf.mxu0
          %1617 = vmatprep.mubr.f32.mxu0 0.0
          %1618 = vmatmul.mubr.f32.gmra.mxu0 %v1460
          %v1619 = vpop.f32.mrf.mxu0
          %v1620 = vadd.f32 0.0, %v1619
          %v1621 = vpop.f32.mrf.mxu0
          %1622 = vmatprep.mubr.f32.mxu0 0.0
          %1623 = vmatmul.mubr.f32.gmra.mxu0 %v1462
          %v1624 = vpop.f32.mrf.mxu0
          %v1625 = vadd.f32 0.0, %v1624
          %v1626 = vpop.f32.mrf.mxu0
          %1627 = vmatprep.mubr.f32.mxu0 0.0
          %1628 = vmatmul.mubr.f32.gmra.mxu0 %v1464
          %v1629 = vpop.f32.mrf.mxu0
          %v1630 = vadd.f32 0.0, %v1629
          %v1631 = vpop.f32.mrf.mxu0
          %1632 = vmatprep.mubr.f32.mxu0 0.0
          %1633 = vmatmul.mubr.f32.gmra.mxu0 %v1466
          %v1634 = vpop.f32.mrf.mxu0
          %v1635 = vadd.f32 0.0, %v1634
          %v1636 = vpop.f32.mrf.mxu0
          %1637 = vmatprep.mubr.f32.mxu0 0.0
          %1638 = vmatmul.mubr.f32.gmra.mxu0 %v1468
          %v1639 = vpop.f32.mrf.mxu0
          %v1640 = vadd.f32 0.0, %v1639
          %v1641 = vpop.f32.mrf.mxu0
          %1642 = vmatprep.mubr.f32.mxu0 0.0
          %1643 = vmatmul.mubr.f32.gmra.mxu0 %v1470
          %v1644 = vpop.f32.mrf.mxu0
          %v1645 = vadd.f32 0.0, %v1644
          %v1646 = vpop.f32.mrf.mxu0
          %1647 = vdwg.mxu0
          %v1648 = vrcp.pop %v1472
          %v1649 = vrcp.pop %v1474
          %v1650 = vrcp.pop %v1476
          %v1651 = vrcp.pop %v1478
          %v1652 = vrcp.pop %v1480
          %v1653 = vrcp.pop %v1482
          %v1654 = vrcp.pop %v1484
          %v1655 = vrcp.pop %v1486
          %v1656 = vrcp.pop %v1488
          %v1657 = vrcp.pop %v1490
          %v1658 = vrcp.pop %v1492
          %v1659 = vrcp.pop %v1494
          %v1660 = vrcp.pop %v1496
          %v1661 = vrcp.pop %v1498
          %v1662 = vrcp.pop %v1500
          %v1663 = vrcp.pop %v1502
          %v1664 = vmul.f32 %v1570, %v1648
          %v1665 = vmul.f32 %v1575, %v1649
          %v1666 = vmul.f32 %v1580, %v1650
          %v1667 = vmul.f32 %v1585, %v1651
          %v1668 = vmul.f32 %v1590, %v1652
          %v1669 = vmul.f32 %v1595, %v1653
          %v1670 = vmul.f32 %v1600, %v1654
          %v1671 = vmul.f32 %v1605, %v1655
          %v1672 = vmul.f32 %v1610, %v1656
          %v1673 = vmul.f32 %v1615, %v1657
          %v1674 = vmul.f32 %v1620, %v1658
          %v1675 = vmul.f32 %v1625, %v1659
          %v1676 = vmul.f32 %v1630, %v1660
          %v1677 = vmul.f32 %v1635, %v1661
          %v1678 = vmul.f32 %v1640, %v1662
          %v1679 = vmul.f32 %v1645, %v1663
          %s1680 = scalar_lea.vmem [#allocation14], %s1155
          %v1681 = vld [vmem:[%s1680] sm:$0xff]
          %v1682 = vld [vmem:[%s1680 + $0x8] sm:$0xff]
          %v1683 = vld [vmem:[#allocation5] sm:$0xff]
          %v1684 = vld [vmem:[#allocation5 + $0x8] sm:$0xff]
          %v1685 = vld [vmem:[#allocation5 + $0x10] sm:$0xff]
          %v1686 = vld [vmem:[#allocation5 + $0x18] sm:$0xff]
          %v1687 = vld [vmem:[#allocation5 + $0x20] sm:$0xff]
          %v1688 = vld [vmem:[#allocation5 + $0x28] sm:$0xff]
          %v1689 = vld [vmem:[#allocation5 + $0x30] sm:$0xff]
          %v1690 = vld [vmem:[#allocation5 + $0x38] sm:$0xff]
          %1691 = vxpose.xlu0.b32.start [1/16] %v1681, 128
          %1692 = vxpose.xlu0.b32.cont [2/16] %v1682, 128
          %1693 = vxpose.xlu0.b32.cont [3/16] 0.0, 128
          %1694 = vxpose.xlu0.b32.cont [4/16] 0.0, 128
          %1695 = vxpose.xlu0.b32.cont [5/16] 0.0, 128
          %1696 = vxpose.xlu0.b32.cont [6/16] 0.0, 128
          %1697 = vxpose.xlu0.b32.cont [7/16] 0.0, 128
          %1698 = vxpose.xlu0.b32.cont [8/16] 0.0, 128
          %1699 = vxpose.xlu0.b32.cont [9/16] 0.0, 128
          %1700 = vxpose.xlu0.b32.cont [10/16] 0.0, 128
          %1701 = vxpose.xlu0.b32.cont [11/16] 0.0, 128
          %1702 = vxpose.xlu0.b32.cont [12/16] 0.0, 128
          %1703 = vxpose.xlu0.b32.cont [13/16] 0.0, 128
          %1704 = vxpose.xlu0.b32.cont [14/16] 0.0, 128
          %1705 = vxpose.xlu0.b32.cont [15/16] 0.0, 128
          %1706 = vxpose.xlu0.b32.end [16/16] 0.0, 128
          %v1707 = vpop.trf.xlu0
          %v1708 = vpop.trf.xlu0
          %v1709 = vpop.trf.xlu0
          %v1710 = vpop.trf.xlu0
          %v1711 = vpop.trf.xlu0
          %v1712 = vpop.trf.xlu0
          %v1713 = vpop.trf.xlu0
          %v1714 = vpop.trf.xlu0
          %v1715 = vpop.trf.xlu0
          %v1716 = vpop.trf.xlu0
          %v1717 = vpop.trf.xlu0
          %v1718 = vpop.trf.xlu0
          %v1719 = vpop.trf.xlu0
          %v1720 = vpop.trf.xlu0
          %v1721 = vpop.trf.xlu0
          %v1722 = vpop.trf.xlu0
          %v1724 = vsel %vm1197, %v1707, 0
          %v1727 = vsel %vm1197, %v1708, 0
          %v1730 = vsel %vm1197, %v1709, 0
          %v1733 = vsel %vm1197, %v1710, 0
          %v1736 = vsel %vm1197, %v1711, 0
          %v1739 = vsel %vm1197, %v1712, 0
          %v1742 = vsel %vm1197, %v1713, 0
          %v1745 = vsel %vm1197, %v1714, 0
          %v1748 = vsel %vm1197, %v1664, 0
          %v1751 = vsel %vm1197, %v1665, 0
          %v1754 = vsel %vm1197, %v1666, 0
          %v1757 = vsel %vm1197, %v1667, 0
          %v1760 = vsel %vm1197, %v1668, 0
          %v1763 = vsel %vm1197, %v1669, 0
          %v1766 = vsel %vm1197, %v1670, 0
          %v1769 = vsel %vm1197, %v1671, 0
          %v1772 = vsel %vm1197, %v1672, 0
          %v1775 = vsel %vm1197, %v1673, 0
          %v1778 = vsel %vm1197, %v1674, 0
          %v1781 = vsel %vm1197, %v1675, 0
          %v1784 = vsel %vm1197, %v1676, 0
          %v1787 = vsel %vm1197, %v1677, 0
          %v1790 = vsel %vm1197, %v1678, 0
          %v1793 = vsel %vm1197, %v1679, 0
          %1795 = vmatprep.subr.mxu0 0.0
          %1796 = vmatpush1.xpose.msra.mxu0 %v1793
          %1797 = vmatprep.subr.mxu0 0.0
          %1798 = vmatpush1.xpose.msra.mxu0 %v1790
          %1799 = vmatprep.subr.mxu0 0.0
          %1800 = vmatpush1.xpose.msra.mxu0 %v1787
          %1801 = vmatprep.subr.mxu0 0.0
          %1802 = vmatpush1.xpose.msra.mxu0 %v1784
          %1803 = vmatprep.subr.mxu0 0.0
          %1804 = vmatpush1.xpose.msra.mxu0 %v1781
          %1805 = vmatprep.subr.mxu0 0.0
          %1806 = vmatpush1.xpose.msra.mxu0 %v1778
          %1807 = vmatprep.subr.mxu0 0.0
          %1808 = vmatpush1.xpose.msra.mxu0 %v1775
          %1809 = vmatprep.subr.mxu0 0.0
          %1810 = vmatpush1.xpose.msra.mxu0 %v1772
          %1811 = vmatprep.subr.mxu0 0.0
          %1812 = vmatpush1.xpose.msra.mxu0 %v1769
          %1813 = vmatprep.subr.mxu0 0.0
          %1814 = vmatpush1.xpose.msra.mxu0 %v1766
          %1815 = vmatprep.subr.mxu0 0.0
          %1816 = vmatpush1.xpose.msra.mxu0 %v1763
          %1817 = vmatprep.subr.mxu0 0.0
          %1818 = vmatpush1.xpose.msra.mxu0 %v1760
          %1819 = vmatprep.subr.mxu0 0.0
          %1820 = vmatpush1.xpose.msra.mxu0 %v1757
          %1821 = vmatprep.subr.mxu0 0.0
          %1822 = vmatpush1.xpose.msra.mxu0 %v1754
          %1823 = vmatprep.subr.mxu0 0.0
          %1824 = vmatpush1.xpose.msra.mxu0 %v1751
          %1825 = vmatprep.subr.mxu0 0.0
          %1826 = vmatpush1.xpose.msra.mxu0 %v1748
          %1827 = vmatprep.subr.mxu0 0.0
          %1828 = vmatpush2.xpose.msra.mxu0 0.0
          %1829 = vmatprep.subr.mxu0 0.0
          %1830 = vmatpush2.xpose.msra.mxu0 0.0
          %1831 = vmatprep.subr.mxu0 0.0
          %1832 = vmatpush2.xpose.msra.mxu0 0.0
          %1833 = vmatprep.subr.mxu0 0.0
          %1834 = vmatpush2.xpose.msra.mxu0 0.0
          %1835 = vmatprep.subr.mxu0 0.0
          %1836 = vmatpush2.xpose.msra.mxu0 0.0
          %1837 = vmatprep.subr.mxu0 0.0
          %1838 = vmatpush2.xpose.msra.mxu0 0.0
          %1839 = vmatprep.subr.mxu0 0.0
          %1840 = vmatpush2.xpose.msra.mxu0 0.0
          %1841 = vmatprep.subr.mxu0 0.0
          %1842 = vmatpush2.xpose.msra.mxu0 0.0
          %1843 = vmatprep.subr.mxu0 0.0
          %1844 = vmatpush2.xpose.msra.mxu0 0.0
          %1845 = vmatprep.subr.mxu0 0.0
          %1846 = vmatpush2.xpose.msra.mxu0 0.0
          %1847 = vmatprep.subr.mxu0 0.0
          %1848 = vmatpush2.xpose.msra.mxu0 0.0
          %1849 = vmatprep.subr.mxu0 0.0
          %1850 = vmatpush2.xpose.msra.mxu0 0.0
          %1851 = vmatprep.subr.mxu0 0.0
          %1852 = vmatpush2.xpose.msra.mxu0 0.0
          %1853 = vmatprep.subr.mxu0 0.0
          %1854 = vmatpush2.xpose.msra.mxu0 0.0
          %1855 = vmatprep.subr.mxu0 0.0
          %1856 = vmatpush2.xpose.msra.mxu0 0.0
          %1857 = vmatprep.subr.mxu0 0.0
          %1858 = vmatpush2.xpose.msra.mxu0 0.0
          %1859 = vmatprep.mubr.f32.mxu0 0.0
          %1860 = vmatmul.mubr.f32.gmra.mxu0 %v1724
          %v1861 = vpop.f32.mrf.mxu0
          %v1862 = vadd.f32 0.0, %v1861
          %v1863 = vpop.f32.mrf.mxu0
          %1864 = vmatprep.mubr.f32.mxu0 0.0
          %1865 = vmatmul.mubr.f32.gmra.mxu0 %v1727
          %v1866 = vpop.f32.mrf.mxu0
          %v1867 = vadd.f32 0.0, %v1866
          %v1868 = vpop.f32.mrf.mxu0
          %1869 = vmatprep.mubr.f32.mxu0 0.0
          %1870 = vmatmul.mubr.f32.gmra.mxu0 %v1730
          %v1871 = vpop.f32.mrf.mxu0
          %v1872 = vadd.f32 0.0, %v1871
          %v1873 = vpop.f32.mrf.mxu0
          %1874 = vmatprep.mubr.f32.mxu0 0.0
          %1875 = vmatmul.mubr.f32.gmra.mxu0 %v1733
          %v1876 = vpop.f32.mrf.mxu0
          %v1877 = vadd.f32 0.0, %v1876
          %v1878 = vpop.f32.mrf.mxu0
          %1879 = vmatprep.mubr.f32.mxu0 0.0
          %1880 = vmatmul.mubr.f32.gmra.mxu0 %v1736
          %v1881 = vpop.f32.mrf.mxu0
          %v1882 = vadd.f32 0.0, %v1881
          %v1883 = vpop.f32.mrf.mxu0
          %1884 = vmatprep.mubr.f32.mxu0 0.0
          %1885 = vmatmul.mubr.f32.gmra.mxu0 %v1739
          %v1886 = vpop.f32.mrf.mxu0
          %v1887 = vadd.f32 0.0, %v1886
          %v1888 = vpop.f32.mrf.mxu0
          %1889 = vmatprep.mubr.f32.mxu0 0.0
          %1890 = vmatmul.mubr.f32.gmra.mxu0 %v1742
          %v1891 = vpop.f32.mrf.mxu0
          %v1892 = vadd.f32 0.0, %v1891
          %v1893 = vpop.f32.mrf.mxu0
          %1894 = vmatprep.mubr.f32.mxu0 0.0
          %1895 = vmatmul.mubr.f32.gmra.mxu0 %v1745
          %v1896 = vpop.f32.mrf.mxu0
          %v1897 = vadd.f32 0.0, %v1896
          %v1898 = vpop.f32.mrf.mxu0
          %1899 = vdwg.mxu0
          %v1900 = vadd.f32 %v1683, %v1862
          %v1901 = vadd.f32 %v1684, %v1867
          %v1902 = vadd.f32 %v1685, %v1872
          %v1903 = vadd.f32 %v1686, %v1877
          %v1904 = vadd.f32 %v1687, %v1882
          %v1905 = vadd.f32 %v1688, %v1887
          %v1906 = vadd.f32 %v1689, %v1892
          %v1907 = vadd.f32 %v1690, %v1897
          %1908 = vst [vmem:[#allocation5] sm:$0xff] %v1900
          %1909 = vst [vmem:[#allocation5 + $0x8] sm:$0xff] %v1901
          %1910 = vst [vmem:[#allocation5 + $0x10] sm:$0xff] %v1902
          %1911 = vst [vmem:[#allocation5 + $0x18] sm:$0xff] %v1903
          %1912 = vst [vmem:[#allocation5 + $0x20] sm:$0xff] %v1904
          %1913 = vst [vmem:[#allocation5 + $0x28] sm:$0xff] %v1905
          %1914 = vst [vmem:[#allocation5 + $0x30] sm:$0xff] %v1906
          %1915 = vst [vmem:[#allocation5 + $0x38] sm:$0xff] %v1907
        $region93: #{tpu_custom_call.1} parent=63 // loop_footer
          %s1154 = sadd.s32 1, %s1150
        $region94: #{tpu_custom_call.1} parent=63 // loop_footer_branch
          %1149 = sbr.rel target = $region90
        $region95: #{tpu_custom_call.1} parent=63 // loop_exit
          _
        %v1916 = vld [vmem:[#allocation5] sm:$0xff]
        %v1917 = vld [vmem:[#allocation5 + $0x8] sm:$0xff]
        %v1918 = vld [vmem:[#allocation5 + $0x10] sm:$0xff]
        %v1919 = vld [vmem:[#allocation5 + $0x18] sm:$0xff]
        %v1920 = vld [vmem:[#allocation5 + $0x20] sm:$0xff]
        %v1921 = vld [vmem:[#allocation5 + $0x28] sm:$0xff]
        %v1922 = vld [vmem:[#allocation5 + $0x30] sm:$0xff]
        %v1923 = vld [vmem:[#allocation5 + $0x38] sm:$0xff]
        %v1924 = vld [vmem:[%s10] sm:$0xff]
        %v1925 = vld [vmem:[%s10 + $0x8] sm:$0xff]
        %v1926 = vld [vmem:[%s10 + $0x10] sm:$0xff]
        %v1927 = vld [vmem:[%s10 + $0x18] sm:$0xff]
        %v1928 = vld [vmem:[%s10 + $0x20] sm:$0xff]
        %v1929 = vld [vmem:[%s10 + $0x28] sm:$0xff]
        %v1930 = vld [vmem:[%s10 + $0x30] sm:$0xff]
        %v1931 = vld [vmem:[%s10 + $0x38] sm:$0xff]
        %1933 = vset.pattern.permute.xlu0 0
        %1934 = vperm.xlu0 %1933, %v1924
        %v1935 = vpop.permute.xlu0 %1934
        %1938 = vset.pattern.permute.xlu0 0
        %1939 = vperm.xlu0 %1938, %v1925
        %v1940 = vpop.permute.xlu0 %1939
        %1943 = vset.pattern.permute.xlu0 0
        %1944 = vperm.xlu0 %1943, %v1926
        %v1945 = vpop.permute.xlu0 %1944
        %1948 = vset.pattern.permute.xlu0 0
        %1949 = vperm.xlu0 %1948, %v1927
        %v1950 = vpop.permute.xlu0 %1949
        %1953 = vset.pattern.permute.xlu0 0
        %1954 = vperm.xlu0 %1953, %v1928
        %v1955 = vpop.permute.xlu0 %1954
        %1958 = vset.pattern.permute.xlu0 0
        %1959 = vperm.xlu0 %1958, %v1929
        %v1960 = vpop.permute.xlu0 %1959
        %1963 = vset.pattern.permute.xlu0 0
        %1964 = vperm.xlu0 %1963, %v1930
        %v1965 = vpop.permute.xlu0 %1964
        %1968 = vset.pattern.permute.xlu0 0
        %1969 = vperm.xlu0 %1968, %v1931
        %v1970 = vpop.permute.xlu0 %1969
        %v1972 = vadd.f32 %v1916, %v1935
        %v1973 = vadd.f32 %v1917, %v1940
        %v1974 = vadd.f32 %v1918, %v1945
        %v1975 = vadd.f32 %v1919, %v1950
        %v1976 = vadd.f32 %v1920, %v1955
        %v1977 = vadd.f32 %v1921, %v1960
        %v1978 = vadd.f32 %v1922, %v1965
        %v1979 = vadd.f32 %v1923, %v1970
        %1980 = vst [vmem:[%s514] sm:$0xff] %v1972
        %1981 = vst [vmem:[%s514 + $0x8] sm:$0xff] %v1973
        %1982 = vst [vmem:[%s514 + $0x10] sm:$0xff] %v1974
        %1983 = vst [vmem:[%s514 + $0x18] sm:$0xff] %v1975
        %1984 = vst [vmem:[%s514 + $0x20] sm:$0xff] %v1976
        %1985 = vst [vmem:[%s514 + $0x28] sm:$0xff] %v1977
        %1986 = vst [vmem:[%s514 + $0x30] sm:$0xff] %v1978
        %1987 = vst [vmem:[%s514 + $0x38] sm:$0xff] %v1979
        %s1988 = sand.u32 %s300, 1
        %s1989 = scalar_lea.sflag [#allocation8], %s1988
        %s1990 = sand.u32 %s300, 1
        %s1991 = smul.addr %s1990, 64
        %s1992 = scalar_lea.vmem [#allocation15], %s1991
        // Predicated region
        $region96: #{tpu_custom_call.1} parent=63 // pred_check
          %p1993 = pneg %p310
        $region97: #{tpu_custom_call.1} parent=63 // pred_check_branch
          %1995 = sbr.rel (%p1993) target = $region99
        $region98: #{tpu_custom_call.1} parent=63 // pred_region
          %s1997 = ssub.s32 1024, 1024
          %1998 = vsyncadd %s1989, %s1997
          %s1999 = smul.addr %s34, 8
          %s2000 = sadd.s32 %s35, %s1999
          %s2001 = smul.addr %s2000, 128
          %s2002 = scalar_lea.hbm %s11, %s2001
          %s2003 = sshll.u32 %s1992, 4
          %s2004 = int_to_ptr.vmem [resolvable:$true] %s2003
          %2009 = dma.vmem_to_hbm [thread:$0]  %s2004, 1024, %s2002, %s1989, 128, 128, 8
        $region99: #{tpu_custom_call.1} parent=63 // pred_fallthru
          _
      $region64: #{tpu_custom_call.1} parent=5 // pred_fallthru
        _
      %p2010 = scmp.le.s32.totalorder 2, %s25
      // Predicated region
      $region100: #{tpu_custom_call.1} parent=5 // pred_check
        %p2011 = pneg %p2010
      $region101: #{tpu_custom_call.1} parent=5 // pred_check_branch
        %2013 = sbr.rel (%p2011) target = $region103
      $region102: #{tpu_custom_call.1} parent=5 // pred_region
        %s2014 = ssub.s32 %s25, 2
        // Predicated region
        $region104: #{tpu_custom_call.1} parent=102 // pred_check
          %p2015 = pneg %p316
        $region105: #{tpu_custom_call.1} parent=102 // pred_check_branch
          %2017 = sbr.rel (%p2015) target = $region107
        $region106: #{tpu_custom_call.1} parent=102 // pred_region
          %s2018 = sand.u32 %s301, 1
          %s2019 = scalar_lea.sflag [#allocation8], %s2018
          %s2020 = sand.u32 %s301, 1
          %s2021 = smul.addr %s2020, 64
          %s2022 = scalar_lea.vmem [#allocation15], %s2021
          %2023 = dma.done %s2019, 1024
        $region107: #{tpu_custom_call.1} parent=102 // pred_fallthru
          _
      $region103: #{tpu_custom_call.1} parent=5 // pred_fallthru
        _
    $region6: #{tpu_custom_call.1} parent=1 // loop_footer
      %s29 = sadd.s32 1, %s25
    $region7: #{tpu_custom_call.1} parent=1 // loop_footer_branch
      %24 = sbr.rel target = $region3
    $region8: #{tpu_custom_call.1} parent=1 // loop_exit
      _
    %2024 = vsyncpa [#allocation7], 1
    %s2025 = scalar_lea.sflag [#allocation7], 1
    %2026 = vsyncpa %s2025, 1
    %2027 = vsyncpa [#allocation10], 1
    %2028 = vsyncpa [#allocation13], 1
    %2029 = vsyncpa [#allocation8], 1
    %s2030 = scalar_lea.sflag [#allocation8], 1
    %2031 = vsyncpa %s2030, 1

</llo_original>
